<compile_context>
chip_gen: v7x
topology: tpu7x:2x2x1
jax: 0.10.0
libtpu: 0.0.40
codegen_flags: <defaults>
</compile_context>

<pallas_src>
import functools
import numpy as np
import jax
import jax.numpy as jnp
from jax.experimental import pallas as pl
from jax.experimental.pallas import tpu as pltpu

TAIL_BOUND = 3.0      # normflows CoupledRationalQuadraticSpline default
MIN_BIN_WIDTH = 1e-3
MIN_BIN_HEIGHT = 1e-3
MIN_DERIVATIVE = 1e-3


def _pick_tile_n():
    # 256-row LHS tiles for the 256x256-MXU generations (v6e/v7x), 128 otherwise (v5e/v4).
    try:
        kind = jax.devices()[0].device_kind.lower()
    except Exception:
        return 128
    return 256 if ("v6" in kind or "v7" in kind) else 128


TILE_N = _pick_tile_n()


# ----------------------------- Pallas kernels ------------------------------

def _block_kernel(hidden_layers, s_ref, c_ref, lu_wt_ref, lu_b_ref, *refs):
    """Fused per-flow-block hot path for one TILE_N row tile:
         LULinearPermute.inverse linear part (all permutations folded into the weight)
         followed by the nflows ResidualNet spline hyper-network.
       Matmul operands are bf16, accumulation f32; everything stays in VMEM."""
    s2_ref, raw_ref = refs[-2], refs[-1]
    w = refs[:-2]
    c = c_ref[...]                                      # bf16 context tile

    # LU linear: s @ (L U)^T with rows/cols pre-permuted at init, plus bias.
    z = (jnp.dot(s_ref[...].astype(jnp.bfloat16), lu_wt_ref[...],
                 preferred_element_type=jnp.float32) + lu_b_ref[...])
    s2_ref[...] = z

    # ResidualNet initial layer: Linear([x_id, ctx]).  The x-part weight was padded
    # with zero rows for the transform half, so the full de-interleaved state can be
    # fed straight in (no in-kernel lane slice).
    zb = z.astype(jnp.bfloat16)
    h = (jnp.dot(zb, w[0][...], preferred_element_type=jnp.float32)
         + jnp.dot(c, w[1][...], preferred_element_type=jnp.float32)
         + w[2][...])
    i = 3
    for _ in range(hidden_layers):
        t = jnp.maximum(h, 0.0).astype(jnp.bfloat16)
        t = jnp.dot(t, w[i][...], preferred_element_type=jnp.float32) + w[i + 1][...]
        t = jnp.maximum(t, 0.0).astype(jnp.bfloat16)     # dropout == identity at inference
        t = jnp.dot(t, w[i + 2][...], preferred_element_type=jnp.float32) + w[i + 3][...]
        g = jnp.dot(c, w[i + 4][...], preferred_element_type=jnp.float32) + w[i + 5][...]
        h = h + t * jax.nn.sigmoid(g)                    # F.glu(cat(t, g)) == t * sigmoid(g)
        i += 6
    # Final layer: columns pre-permuted into [widths | heights | derivs] slabs and
    # pre-scaled by 1/sqrt(hidden_features) for the widths/heights part.
    raw_ref[...] = (jnp.dot(h.astype(jnp.bfloat16), w[i][...],
                            preferred_element_type=jnp.float32) + w[i + 1][...])


def _base_nll_kernel(z_ref, c_ref, ld_ref, wmu_ref, bmu_ref, wls_ref, bls_ref, o_ref):
    """ConditionalDiagGaussian.log_prob fused with the accumulated flow log-det and negation."""
    z = z_ref[...]
    c = c_ref[...]
    mu = jnp.dot(c, wmu_ref[...], preferred_element_type=jnp.float32) + bmu_ref[...]
    ls = jnp.dot(c, wls_ref[...], preferred_element_type=jnp.float32) + bls_ref[...]
    d = z.shape[-1]
    zsc = (z - mu) * jnp.exp(-ls)
    log_p = (-0.5 * d * jnp.log(2.0 * jnp.pi)
             - jnp.sum(ls + 0.5 * zsc * zsc, axis=-1, keepdims=True))
    o_ref[...] = -(log_p + ld_ref[...])


# ----------------------------- Pallas wrappers ------------------------------

def _row_spec(f):
    return pl.BlockSpec((TILE_N, f), lambda i: (i, 0))


def _full_spec(a):
    return pl.BlockSpec(a.shape, lambda i: (0, 0))


def block_apply(s, ctx_bf16, lu_wt, lu_bias, resnet_w, hidden_layers):
    n, d = s.shape
    c = ctx_bf16.shape[-1]
    d_out = resnet_w[-1].shape[-1]
    kernel = functools.partial(_block_kernel, hidden_layers)
    return pl.pallas_call(
        kernel,
        grid=(n // TILE_N,),
        in_specs=([_row_spec(d), _row_spec(c), _full_spec(lu_wt), _full_spec(lu_bias)]
                  + [_full_spec(w) for w in resnet_w]),
        out_specs=(_row_spec(d), _row_spec(d_out)),
        out_shape=(jax.ShapeDtypeStruct((n, d), jnp.float32),
                   jax.ShapeDtypeStruct((n, d_out), jnp.float32)),
        compiler_params=pltpu.CompilerParams(dimension_semantics=("parallel",)),
    )(s, ctx_bf16, lu_wt, lu_bias, *resnet_w)


def base_nll(z, ctx_bf16, log_det, wmu, bmu, wls, bls):
    n, d = z.shape
    c = ctx_bf16.shape[-1]
    return pl.pallas_call(
        _base_nll_kernel,
        grid=(n // TILE_N,),
        in_specs=[_row_spec(d), _row_spec(c), _row_spec(1),
                  _full_spec(wmu), _full_spec(bmu), _full_spec(wls), _full_spec(bls)],
        out_specs=_row_spec(1),
        out_shape=jax.ShapeDtypeStruct((n, 1), jnp.float32),
        compiler_params=pltpu.CompilerParams(dimension_semantics=("parallel",)),
    )(z, ctx_bf16, log_det, wmu, bmu, wls, bls)


# --------------------- JAX glue: rational-quadratic spline ------------------

def _normalize_spline_params(uw, uh, ud_inner):
    """nflows rational_quadratic_spline parameter normalization (linear tails).
       Accepts [..., K] / [..., K-1]; returns (cumwidths, widths, cumheights, heights,
       delta, derivatives)."""
    k = uw.shape[-1]
    const = float(np.log(np.exp(1.0 - MIN_DERIVATIVE) - 1.0))
    pad_d = [(0, 0)] * (ud_inner.ndim - 1) + [(1, 1)]
    derivatives = MIN_DERIVATIVE + jax.nn.softplus(jnp.pad(ud_inner, pad_d, constant_values=const))

    def _cum(u, min_size):
        v = jax.nn.softmax(u, axis=-1)
        v = min_size + (1.0 - min_size * k) * v
        cv = jnp.cumsum(v, axis=-1)
        cv = jnp.pad(cv, [(0, 0)] * (u.ndim - 1) + [(1, 0)])
        cv = 2.0 * TAIL_BOUND * cv - TAIL_BOUND
        cv = cv.at[..., 0].set(-TAIL_BOUND)
        cv = cv.at[..., -1].set(TAIL_BOUND)
        return cv, cv[..., 1:] - cv[..., :-1]

    cumwidths, widths = _cum(uw, MIN_BIN_WIDTH)
    cumheights, heights = _cum(uh, MIN_BIN_HEIGHT)
    delta = heights / widths
    return cumwidths, widths, cumheights, heights, delta, derivatives


def _rq_spline_core(x, cumwidths, widths, cumheights, heights, delta, derivatives):
    """Forward RQ spline with linear tails.  x: [N, F]; tables broadcastable to
       [N, F, K(+1)] (either per-row [N,F,...] or per-feature [F,...])."""
    k = widths.shape[-1]
    inside = (x >= -TAIL_BOUND) & (x <= TAIL_BOUND)
    xc = jnp.clip(x, -TAIL_BOUND, TAIL_BOUND)

    search = cumwidths.at[..., -1].add(1e-6)
    bin_idx = jnp.sum((xc[..., None] >= search).astype(jnp.int32), axis=-1) - 1
    bin_idx = jnp.clip(bin_idx, 0, k - 1)
    onehot = jax.nn.one_hot(bin_idx, k, dtype=x.dtype)
    pick = lambda t: jnp.sum(t * onehot, axis=-1)

    in_cw = pick(cumwidths[..., :-1]);  in_w = pick(widths)
    in_ch = pick(cumheights[..., :-1]); in_h = pick(heights)
    in_delta = pick(delta)
    in_d = pick(derivatives[..., :-1]); in_d1 = pick(derivatives[..., 1:])

    theta = (xc - in_cw) / in_w
    tt = theta * (1.0 - theta)
    numerator = in_h * (in_delta * theta * theta + in_d * tt)
    denominator = in_delta + (in_d + in_d1 - 2.0 * in_delta) * tt
    y = in_ch + numerator / denominator
    dnum = in_delta * in_delta * (in_d1 * theta * theta + 2.0 * in_delta * tt
                                  + in_d * (1.0 - theta) ** 2)
    lad = jnp.log(dnum) - 2.0 * jnp.log(denominator)
    return jnp.where(inside, y, x), jnp.where(inside, lad, 0.0)


# ----------------------------- parameters -----------------------------------

def _uniform(key, shape, bound):
    return jax.random.uniform(key, shape, jnp.float32, -bound, bound)


def _deinterleave_perm(d):
    # [0,2,4,...,1,3,5,...]: identity (even) features first, transform (odd) features last.
    return np.concatenate([np.arange(0, d, 2), np.arange(1, d, 2)])


def _init_spline_block(key, d, c, h, hl, k):
    d_half = d // 2
    p3 = 3 * k - 1
    d_out = d_half * p3
    ks = list(jax.random.split(key, 3 + 6 * hl + 2 + 3))
    pop = lambda: ks.pop(0)

    b0 = 1.0 / np.sqrt(d_half + c)
    w_x = _uniform(pop(), (d_half, h), b0)
    # zero rows for the transform half -> kernel can feed the full state (no lane slice)
    w_x = jnp.concatenate([w_x, jnp.zeros((d - d_half, h), jnp.float32)], axis=0)
    w_c = _uniform(pop(), (c, h), b0)
    b_i = _uniform(pop(), (1, h), b0)
    blk = []
    for _ in range(hl):
        bh = 1.0 / np.sqrt(h)
        bc = 1.0 / np.sqrt(c)
        blk += [_uniform(pop(), (h, h), bh), _uniform(pop(), (1, h), bh),
                _uniform(pop(), (h, h), bh), _uniform(pop(), (1, h), bh),
                _uniform(pop(), (c, h), bc), _uniform(pop(), (1, h), bc)]
    bf_ = 1.0 / np.sqrt(h)
    w_f = _uniform(pop(), (h, d_out), bf_)
    b_f = _uniform(pop(), (1, d_out), bf_)

    # Fold (at init, free): reorder final-layer columns into three lane-contiguous slabs
    # [widths | heights | derivs] (feature-major, bin-minor) and pre-apply the
    # 1/sqrt(hidden_features) scaling of the unnormalized widths/heights.
    wcols = np.array([f * p3 + j for f in range(d_half) for j in range(k)])
    hcols = np.array([f * p3 + k + j for f in range(d_half) for j in range(k)])
    dcols = np.array([f * p3 + 2 * k + j for f in range(d_half) for j in range(k - 1)])
    col_perm = np.concatenate([wcols, hcols, dcols])
    col_scale = np.concatenate([np.full(2 * d_half * k, 1.0 / np.sqrt(h), np.float32),
                                np.ones(d_half * (k - 1), np.float32)])
    w_f = w_f[:, col_perm] * col_scale
    b_f = b_f[:, col_perm] * col_scale

    W = lambda a: a.astype(jnp.bfloat16)   # matmul weights -> bf16 (MXU); biases stay f32
    weights = [W(w_x), W(w_c), b_i]
    for j in range(hl):
        w1, b1, w2, b2, wcx, bcx = blk[6 * j: 6 * j + 6]
        weights += [W(w1), b1, W(w2), b2, W(wcx), bcx]
    weights += [W(w_f), b_f]

    # Unconditional RQ-CDF on the identity half (apply_unconditional_transform=True).
    # Its softmax/cumsum/softplus normalization is row-independent -> hoisted to init.
    uc_w = 0.3 * jax.random.normal(pop(), (d_half, k), jnp.float32)
    uc_h = 0.3 * jax.random.normal(pop(), (d_half, k), jnp.float32)
    uc_d = 0.3 * jax.random.normal(pop(), (d_half, k - 1), jnp.float32)
    uc_tables = _normalize_spline_params(uc_w, uc_h, uc_d)
    return dict(resnet=weights, uc_tables=uc_tables)


def _init_lu_block(key, d, deint, deint_inv):
    k1, k2, k3, k4 = jax.random.split(key, 4)
    perm = np.asarray(jax.random.permutation(k1, d))
    tril_i, tril_j = np.tril_indices(d, -1)
    triu_i, triu_j = np.triu_indices(d, 1)
    lower_entries = 0.1 * jax.random.normal(k2, (len(tril_i),), jnp.float32)
    upper_entries = 0.1 * jax.random.normal(k3, (len(triu_i),), jnp.float32)
    unc_diag = 0.1 * jax.random.normal(k4, (d,), jnp.float32)
    upper_diag = jax.nn.softplus(unc_diag) + 1e-3
    lower = jnp.eye(d, dtype=jnp.float32).at[tril_i, tril_j].set(lower_entries)
    upper = jnp.zeros((d, d), jnp.float32).at[triu_i, triu_j].set(upper_entries)
    upper = upper.at[jnp.arange(d), jnp.arange(d)].set(upper_diag)
    wt = (lower @ upper).T   # F.linear(F.linear(z, U), L) == z @ (L U)^T, logdet = +sum log diag U

    # Fold both the LULinearPermute column permutation and the global even/odd
    # de-interleave of the running state into the constant weight:
    #   with s := z[:, deint]:  s_out = s_in @ Wt_fold + bias_fold
    q = deint_inv[perm]
    wt_fold = wt[np.argsort(q), :][:, deint]
    bias_fold = jnp.zeros((1, d), jnp.float32)
    logabsdet = jnp.sum(jnp.log(upper_diag))   # per-sample constant
    return dict(Wt=wt_fold.astype(jnp.bfloat16), bias=bias_fold, logabsdet=logabsdet)


def init_nsf_params(key, latent_size, context_size=256, hidden_size=256,
                    hidden_layers=2, blocks=8, bins=8):
    assert latent_size % 2 == 0
    deint = _deinterleave_perm(latent_size)
    deint_inv = np.argsort(deint)
    ks = jax.random.split(key, 2 * blocks + 1)
    spline = [_init_spline_block(ks[2 * i], latent_size, context_size, hidden_size,
                                 hidden_layers, bins) for i in range(blocks)]
    lu = [_init_lu_block(ks[2 * i + 1], latent_size, deint, deint_inv)
          for i in range(blocks)]
    k1, k2, k3, k4 = jax.random.split(ks[-1], 4)
    bound = 1.0 / np.sqrt(context_size)
    # base-distribution context encoder; columns permuted into the de-interleaved basis
    q0 = dict(
        Wmu=_uniform(k1, (context_size, latent_size), bound)[:, deint].astype(jnp.bfloat16),
        bmu=_uniform(k2, (1, latent_size), bound)[:, deint],
        Wls=_uniform(k3, (context_size, latent_size), bound)[:, deint].astype(jnp.bfloat16),
        bls=_uniform(k4, (1, latent_size), bound)[:, deint])
    return dict(spline=spline, lu=lu, q0=q0, deint=deint,
                latent_size=latent_size, context_size=context_size,
                hidden_size=hidden_size, hidden_layers=hidden_layers,
                blocks=blocks, bins=bins)


# ----------------------------- forward (NLL) --------------------------------

def nsf_nll(x, params, p):
    """x: [batch, time, latent], params: [batch, time, context] -> NLL [batch, time]."""
    d = p["latent_size"]
    k = p["bins"]
    hl = p["hidden_layers"]
    d_half = d // 2
    deint = p["deint"]

    bs = jnp.broadcast_shapes(x.shape[:-1], params.shape[:-1])
    xf = jnp.broadcast_to(x, bs + (x.shape[-1],)).reshape(-1, x.shape[-1]).astype(jnp.float32)
    cf = jnp.broadcast_to(params, bs + (params.shape[-1],)).reshape(-1, params.shape[-1])
    n = xf.shape[0]
    n_pad = pl.cdiv(n, TILE_N) * TILE_N
    xf = jnp.pad(xf, ((0, n_pad - n), (0, 0)))
    cf = jnp.pad(cf, ((0, n_pad - n), (0, 0))).astype(jnp.bfloat16)  # re-read per block -> bf16

    # running state kept de-interleaved: [identity (even) features | transform (odd) features]
    s = xf[:, deint]
    log_q = jnp.zeros((n_pad, 1), jnp.float32)

    nk = d_half * k
    # flows = [spline_0, lu_0, ..., spline_{B-1}, lu_{B-1}]; log_prob walks them in reverse.
    for b in reversed(range(p["blocks"])):
        lu = p["lu"][b]
        sp = p["spline"][b]
        # fused Pallas kernel: LU linear + ResidualNet hyper-network (weights/perms folded)
        s2, raw = block_apply(s, cf, lu["Wt"], lu["bias"], sp["resnet"], hl)
        log_q = log_q + lu["logabsdet"]

        z_id = s2[:, :d_half]
        z_tr = s2[:, d_half:]
        # conditional spline on the transform half (lane-contiguous slabs -> cheap split)
        uw = raw[:, :nk].reshape(n_pad, d_half, k)
        uh = raw[:, nk:2 * nk].reshape(n_pad, d_half, k)
        ud = raw[:, 2 * nk:].reshape(n_pad, d_half, k - 1)
        z_tr_new, lad_tr = _rq_spline_core(z_tr, *_normalize_spline_params(uw, uh, ud))
        # unconditional spline on the identity half (normalized tables precomputed at init)
        z_id_new, lad_id = _rq_spline_core(z_id, *sp["uc_tables"])

        log_q = (log_q + jnp.sum(lad_tr, -1, keepdims=True)
                 + jnp.sum(lad_id, -1, keepdims=True))
        s = jnp.concatenate([z_id_new, z_tr_new], axis=-1)   # stays de-interleaved

    nll = base_nll(s, cf, log_q, p["q0"]["Wmu"], p["q0"]["bmu"],
                   p["q0"]["Wls"], p["q0"]["bls"])            # [N, 1]  (Pallas)
    return nll[:n, 0].reshape(bs)


# ----------------------------- demo ------------------------------------------

if __name__ == "__main__":
    latent_size, context_size, hidden_size = 8, 32, 32
    hidden_layers, blocks, bins = 2, 2, 8
    batch, time = 2, 8

    key = jax.random.PRNGKey(0)
    kp, kx, kc = jax.random.split(key, 3)
    P = init_nsf_params(kp, latent_size, context_size, hidden_size,
                        hidden_layers, blocks, bins)
    x = jax.random.normal(kx, (batch, time, latent_size), jnp.float32)
    params = jax.random.normal(kc, (batch, time, context_size), jnp.float32)

    nll = nsf_nll(x, params, P)
    nll = jax.block_until_ready(nll)
    assert nll.shape == (batch, time), nll.shape
    assert bool(jnp.all(jnp.isfinite(nll)))
    print("KERNEL_OK")
</pallas_src>

<mosaic_0001>
module attributes {stable_mosaic.version = 11 : i64} {
  func.func @_block_kernel(%arg0: i32, %arg1: memref<128x8xf32, #tpu.memory_space<vmem>>, %arg2: memref<128x32xbf16, #tpu.memory_space<vmem>>, %arg3: memref<8x8xbf16, #tpu.memory_space<vmem>>, %arg4: memref<1x8xf32, #tpu.memory_space<vmem>>, %arg5: memref<8x32xbf16, #tpu.memory_space<vmem>>, %arg6: memref<32x32xbf16, #tpu.memory_space<vmem>>, %arg7: memref<1x32xf32, #tpu.memory_space<vmem>>, %arg8: memref<32x32xbf16, #tpu.memory_space<vmem>>, %arg9: memref<1x32xf32, #tpu.memory_space<vmem>>, %arg10: memref<32x32xbf16, #tpu.memory_space<vmem>>, %arg11: memref<1x32xf32, #tpu.memory_space<vmem>>, %arg12: memref<32x32xbf16, #tpu.memory_space<vmem>>, %arg13: memref<1x32xf32, #tpu.memory_space<vmem>>, %arg14: memref<32x32xbf16, #tpu.memory_space<vmem>>, %arg15: memref<1x32xf32, #tpu.memory_space<vmem>>, %arg16: memref<32x32xbf16, #tpu.memory_space<vmem>>, %arg17: memref<1x32xf32, #tpu.memory_space<vmem>>, %arg18: memref<32x32xbf16, #tpu.memory_space<vmem>>, %arg19: memref<1x32xf32, #tpu.memory_space<vmem>>, %arg20: memref<32x92xbf16, #tpu.memory_space<vmem>>, %arg21: memref<1x92xf32, #tpu.memory_space<vmem>>, %arg22: memref<128x8xf32, #tpu.memory_space<vmem>>, %arg23: memref<128x92xf32, #tpu.memory_space<vmem>>) attributes {dimension_semantics = [#tpu.dimension_semantics<parallel>], iteration_bounds = array<i64: 1>, scalar_prefetch = 0 : i64, scratch_operands = 0 : i64, tpu.core_type = #tpu.core_type<tc>, window_params = [{transform_indices = @transform_0, window_bounds = array<i64: 128, 8>}, {transform_indices = @transform_1, window_bounds = array<i64: 128, 32>}, {pipeline_mode = #tpu.pipeline_mode<synchronous>, transform_indices = @transform_2, window_bounds = array<i64: 8, 8>}, {pipeline_mode = #tpu.pipeline_mode<synchronous>, transform_indices = @transform_3, window_bounds = array<i64: 1, 8>}, {pipeline_mode = #tpu.pipeline_mode<synchronous>, transform_indices = @transform_4, window_bounds = array<i64: 8, 32>}, {pipeline_mode = #tpu.pipeline_mode<synchronous>, transform_indices = @transform_5, window_bounds = array<i64: 32, 32>}, {pipeline_mode = #tpu.pipeline_mode<synchronous>, transform_indices = @transform_6, window_bounds = array<i64: 1, 32>}, {pipeline_mode = #tpu.pipeline_mode<synchronous>, transform_indices = @transform_7, window_bounds = array<i64: 32, 32>}, {pipeline_mode = #tpu.pipeline_mode<synchronous>, transform_indices = @transform_8, window_bounds = array<i64: 1, 32>}, {pipeline_mode = #tpu.pipeline_mode<synchronous>, transform_indices = @transform_9, window_bounds = array<i64: 32, 32>}, {pipeline_mode = #tpu.pipeline_mode<synchronous>, transform_indices = @transform_10, window_bounds = array<i64: 1, 32>}, {pipeline_mode = #tpu.pipeline_mode<synchronous>, transform_indices = @transform_11, window_bounds = array<i64: 32, 32>}, {pipeline_mode = #tpu.pipeline_mode<synchronous>, transform_indices = @transform_12, window_bounds = array<i64: 1, 32>}, {pipeline_mode = #tpu.pipeline_mode<synchronous>, transform_indices = @transform_13, window_bounds = array<i64: 32, 32>}, {pipeline_mode = #tpu.pipeline_mode<synchronous>, transform_indices = @transform_14, window_bounds = array<i64: 1, 32>}, {pipeline_mode = #tpu.pipeline_mode<synchronous>, transform_indices = @transform_15, window_bounds = array<i64: 32, 32>}, {pipeline_mode = #tpu.pipeline_mode<synchronous>, transform_indices = @transform_16, window_bounds = array<i64: 1, 32>}, {pipeline_mode = #tpu.pipeline_mode<synchronous>, transform_indices = @transform_17, window_bounds = array<i64: 32, 32>}, {pipeline_mode = #tpu.pipeline_mode<synchronous>, transform_indices = @transform_18, window_bounds = array<i64: 1, 32>}, {pipeline_mode = #tpu.pipeline_mode<synchronous>, transform_indices = @transform_19, window_bounds = array<i64: 32, 92>}, {pipeline_mode = #tpu.pipeline_mode<synchronous>, transform_indices = @transform_20, window_bounds = array<i64: 1, 92>}, {transform_indices = @transform_21, window_bounds = array<i64: 128, 8>}, {transform_indices = @transform_22, window_bounds = array<i64: 128, 92>}]} {
    %c0 = arith.constant 0 : index
    %c0_0 = arith.constant 0 : index
    %0 = vector.load %arg2[%c0, %c0_0] : memref<128x32xbf16, #tpu.memory_space<vmem>>, vector<128x32xbf16>
    %c0_1 = arith.constant 0 : index
    %c0_2 = arith.constant 0 : index
    %1 = vector.load %arg1[%c0_1, %c0_2] : memref<128x8xf32, #tpu.memory_space<vmem>>, vector<128x8xf32>
    %2 = arith.truncf %1 : vector<128x8xf32> to vector<128x8xbf16>
    %c0_3 = arith.constant 0 : index
    %c0_4 = arith.constant 0 : index
    %3 = vector.load %arg3[%c0_3, %c0_4] : memref<8x8xbf16, #tpu.memory_space<vmem>>, vector<8x8xbf16>
    %cst = arith.constant dense<0.000000e+00> : vector<128x8xf32>
    %4 = tpu.matmul %2, %3, %cst {dimension_numbers = #tpu.dot_dimension_numbers<[1], [0], [0], [1], [0, 0, 1, 1], [], []>} : vector<128x8xbf16>, vector<8x8xbf16>, vector<128x8xf32> -> vector<128x8xf32>
    %c0_5 = arith.constant 0 : index
    %c0_6 = arith.constant 0 : index
    %5 = vector.load %arg4[%c0_5, %c0_6] : memref<1x8xf32, #tpu.memory_space<vmem>>, vector<1x8xf32>
    %6 = vector.broadcast %5 : vector<1x8xf32> to vector<128x8xf32>
    %7 = arith.addf %4, %6 : vector<128x8xf32>
    %c0_7 = arith.constant 0 : index
    %c0_8 = arith.constant 0 : index
    %8 = vector.load %arg22[%c0_7, %c0_8] : memref<128x8xf32, #tpu.memory_space<vmem>>, vector<128x8xf32>
    tpu.vector_store %arg22[%c0_7, %c0_8], %7 {strides = array<i32>} : memref<128x8xf32, #tpu.memory_space<vmem>>, vector<128x8xf32>,
    %9 = arith.truncf %7 : vector<128x8xf32> to vector<128x8xbf16>
    %c0_9 = arith.constant 0 : index
    %c0_10 = arith.constant 0 : index
    %10 = vector.load %arg5[%c0_9, %c0_10] : memref<8x32xbf16, #tpu.memory_space<vmem>>, vector<8x32xbf16>
    %cst_11 = arith.constant dense<0.000000e+00> : vector<128x32xf32>
    %11 = tpu.matmul %9, %10, %cst_11 {dimension_numbers = #tpu.dot_dimension_numbers<[1], [0], [0], [1], [0, 0, 1, 1], [], []>} : vector<128x8xbf16>, vector<8x32xbf16>, vector<128x32xf32> -> vector<128x32xf32>
    %c0_12 = arith.constant 0 : index
    %c0_13 = arith.constant 0 : index
    %12 = vector.load %arg6[%c0_12, %c0_13] : memref<32x32xbf16, #tpu.memory_space<vmem>>, vector<32x32xbf16>
    %cst_14 = arith.constant dense<0.000000e+00> : vector<128x32xf32>
    %13 = tpu.matmul %0, %12, %cst_14 {dimension_numbers = #tpu.dot_dimension_numbers<[1], [0], [0], [1], [0, 0, 1, 1], [], []>} : vector<128x32xbf16>, vector<32x32xbf16>, vector<128x32xf32> -> vector<128x32xf32>
    %14 = arith.addf %11, %13 : vector<128x32xf32>
    %c0_15 = arith.constant 0 : index
    %c0_16 = arith.constant 0 : index
    %15 = vector.load %arg7[%c0_15, %c0_16] : memref<1x32xf32, #tpu.memory_space<vmem>>, vector<1x32xf32>
    %16 = vector.broadcast %15 : vector<1x32xf32> to vector<128x32xf32>
    %17 = arith.addf %14, %16 : vector<128x32xf32>
    %cst_17 = arith.constant 0.000000e+00 : f32
    %18 = vector.broadcast %cst_17 : f32 to vector<128x32xf32>
    %19 = arith.maximumf %17, %18 : vector<128x32xf32>
    %20 = arith.truncf %19 : vector<128x32xf32> to vector<128x32xbf16>
    %c0_18 = arith.constant 0 : index
    %c0_19 = arith.constant 0 : index
    %21 = vector.load %arg8[%c0_18, %c0_19] : memref<32x32xbf16, #tpu.memory_space<vmem>>, vector<32x32xbf16>
    %cst_20 = arith.constant dense<0.000000e+00> : vector<128x32xf32>
    %22 = tpu.matmul %20, %21, %cst_20 {dimension_numbers = #tpu.dot_dimension_numbers<[1], [0], [0], [1], [0, 0, 1, 1], [], []>} : vector<128x32xbf16>, vector<32x32xbf16>, vector<128x32xf32> -> vector<128x32xf32>
    %c0_21 = arith.constant 0 : index
    %c0_22 = arith.constant 0 : index
    %23 = vector.load %arg9[%c0_21, %c0_22] : memref<1x32xf32, #tpu.memory_space<vmem>>, vector<1x32xf32>
    %24 = vector.broadcast %23 : vector<1x32xf32> to vector<128x32xf32>
    %25 = arith.addf %22, %24 : vector<128x32xf32>
    %cst_23 = arith.constant 0.000000e+00 : f32
    %26 = vector.broadcast %cst_23 : f32 to vector<128x32xf32>
    %27 = arith.maximumf %25, %26 : vector<128x32xf32>
    %28 = arith.truncf %27 : vector<128x32xf32> to vector<128x32xbf16>
    %c0_24 = arith.constant 0 : index
    %c0_25 = arith.constant 0 : index
    %29 = vector.load %arg10[%c0_24, %c0_25] : memref<32x32xbf16, #tpu.memory_space<vmem>>, vector<32x32xbf16>
    %cst_26 = arith.constant dense<0.000000e+00> : vector<128x32xf32>
    %30 = tpu.matmul %28, %29, %cst_26 {dimension_numbers = #tpu.dot_dimension_numbers<[1], [0], [0], [1], [0, 0, 1, 1], [], []>} : vector<128x32xbf16>, vector<32x32xbf16>, vector<128x32xf32> -> vector<128x32xf32>
    %c0_27 = arith.constant 0 : index
    %c0_28 = arith.constant 0 : index
    %31 = vector.load %arg11[%c0_27, %c0_28] : memref<1x32xf32, #tpu.memory_space<vmem>>, vector<1x32xf32>
    %32 = vector.broadcast %31 : vector<1x32xf32> to vector<128x32xf32>
    %33 = arith.addf %30, %32 : vector<128x32xf32>
    %c0_29 = arith.constant 0 : index
    %c0_30 = arith.constant 0 : index
    %34 = vector.load %arg12[%c0_29, %c0_30] : memref<32x32xbf16, #tpu.memory_space<vmem>>, vector<32x32xbf16>
    %cst_31 = arith.constant dense<0.000000e+00> : vector<128x32xf32>
    %35 = tpu.matmul %0, %34, %cst_31 {dimension_numbers = #tpu.dot_dimension_numbers<[1], [0], [0], [1], [0, 0, 1, 1], [], []>} : vector<128x32xbf16>, vector<32x32xbf16>, vector<128x32xf32> -> vector<128x32xf32>
    %c0_32 = arith.constant 0 : index
    %c0_33 = arith.constant 0 : index
    %36 = vector.load %arg13[%c0_32, %c0_33] : memref<1x32xf32, #tpu.memory_space<vmem>>, vector<1x32xf32>
    %37 = vector.broadcast %36 : vector<1x32xf32> to vector<128x32xf32>
    %38 = arith.addf %35, %37 : vector<128x32xf32>
    %39 = arith.negf %38 : vector<128x32xf32>
    %40 = math.exp %39 : vector<128x32xf32>
    %cst_34 = arith.constant 1.000000e+00 : f32
    %41 = vector.broadcast %cst_34 : f32 to vector<128x32xf32>
    %42 = arith.addf %41, %40 : vector<128x32xf32>
    %43 = arith.divf %41, %42 : vector<128x32xf32>
    %44 = arith.mulf %33, %43 : vector<128x32xf32>
    %45 = arith.addf %17, %44 : vector<128x32xf32>
    %cst_35 = arith.constant 0.000000e+00 : f32
    %46 = vector.broadcast %cst_35 : f32 to vector<128x32xf32>
    %47 = arith.maximumf %45, %46 : vector<128x32xf32>
    %48 = arith.truncf %47 : vector<128x32xf32> to vector<128x32xbf16>
    %c0_36 = arith.constant 0 : index
    %c0_37 = arith.constant 0 : index
    %49 = vector.load %arg14[%c0_36, %c0_37] : memref<32x32xbf16, #tpu.memory_space<vmem>>, vector<32x32xbf16>
    %cst_38 = arith.constant dense<0.000000e+00> : vector<128x32xf32>
    %50 = tpu.matmul %48, %49, %cst_38 {dimension_numbers = #tpu.dot_dimension_numbers<[1], [0], [0], [1], [0, 0, 1, 1], [], []>} : vector<128x32xbf16>, vector<32x32xbf16>, vector<128x32xf32> -> vector<128x32xf32>
    %c0_39 = arith.constant 0 : index
    %c0_40 = arith.constant 0 : index
    %51 = vector.load %arg15[%c0_39, %c0_40] : memref<1x32xf32, #tpu.memory_space<vmem>>, vector<1x32xf32>
    %52 = vector.broadcast %51 : vector<1x32xf32> to vector<128x32xf32>
    %53 = arith.addf %50, %52 : vector<128x32xf32>
    %cst_41 = arith.constant 0.000000e+00 : f32
    %54 = vector.broadcast %cst_41 : f32 to vector<128x32xf32>
    %55 = arith.maximumf %53, %54 : vector<128x32xf32>
    %56 = arith.truncf %55 : vector<128x32xf32> to vector<128x32xbf16>
    %c0_42 = arith.constant 0 : index
    %c0_43 = arith.constant 0 : index
    %57 = vector.load %arg16[%c0_42, %c0_43] : memref<32x32xbf16, #tpu.memory_space<vmem>>, vector<32x32xbf16>
    %cst_44 = arith.constant dense<0.000000e+00> : vector<128x32xf32>
    %58 = tpu.matmul %56, %57, %cst_44 {dimension_numbers = #tpu.dot_dimension_numbers<[1], [0], [0], [1], [0, 0, 1, 1], [], []>} : vector<128x32xbf16>, vector<32x32xbf16>, vector<128x32xf32> -> vector<128x32xf32>
    %c0_45 = arith.constant 0 : index
    %c0_46 = arith.constant 0 : index
    %59 = vector.load %arg17[%c0_45, %c0_46] : memref<1x32xf32, #tpu.memory_space<vmem>>, vector<1x32xf32>
    %60 = vector.broadcast %59 : vector<1x32xf32> to vector<128x32xf32>
    %61 = arith.addf %58, %60 : vector<128x32xf32>
    %c0_47 = arith.constant 0 : index
    %c0_48 = arith.constant 0 : index
    %62 = vector.load %arg18[%c0_47, %c0_48] : memref<32x32xbf16, #tpu.memory_space<vmem>>, vector<32x32xbf16>
    %cst_49 = arith.constant dense<0.000000e+00> : vector<128x32xf32>
    %63 = tpu.matmul %0, %62, %cst_49 {dimension_numbers = #tpu.dot_dimension_numbers<[1], [0], [0], [1], [0, 0, 1, 1], [], []>} : vector<128x32xbf16>, vector<32x32xbf16>, vector<128x32xf32> -> vector<128x32xf32>
    %c0_50 = arith.constant 0 : index
    %c0_51 = arith.constant 0 : index
    %64 = vector.load %arg19[%c0_50, %c0_51] : memref<1x32xf32, #tpu.memory_space<vmem>>, vector<1x32xf32>
    %65 = vector.broadcast %64 : vector<1x32xf32> to vector<128x32xf32>
    %66 = arith.addf %63, %65 : vector<128x32xf32>
    %67 = arith.negf %66 : vector<128x32xf32>
    %68 = math.exp %67 : vector<128x32xf32>
    %cst_52 = arith.constant 1.000000e+00 : f32
    %69 = vector.broadcast %cst_52 : f32 to vector<128x32xf32>
    %70 = arith.addf %69, %68 : vector<128x32xf32>
    %71 = arith.divf %69, %70 : vector<128x32xf32>
    %72 = arith.mulf %61, %71 : vector<128x32xf32>
    %73 = arith.addf %45, %72 : vector<128x32xf32>
    %74 = arith.truncf %73 : vector<128x32xf32> to vector<128x32xbf16>
    %c0_53 = arith.constant 0 : index
    %c0_54 = arith.constant 0 : index
    %75 = vector.load %arg20[%c0_53, %c0_54] : memref<32x92xbf16, #tpu.memory_space<vmem>>, vector<32x92xbf16>
    %cst_55 = arith.constant dense<0.000000e+00> : vector<128x92xf32>
    %76 = tpu.matmul %74, %75, %cst_55 {dimension_numbers = #tpu.dot_dimension_numbers<[1], [0], [0], [1], [0, 0, 1, 1], [], []>} : vector<128x32xbf16>, vector<32x92xbf16>, vector<128x92xf32> -> vector<128x92xf32>
    %c0_56 = arith.constant 0 : index
    %c0_57 = arith.constant 0 : index
    %77 = vector.load %arg21[%c0_56, %c0_57] : memref<1x92xf32, #tpu.memory_space<vmem>>, vector<1x92xf32>
    %78 = vector.broadcast %77 : vector<1x92xf32> to vector<128x92xf32>
    %79 = arith.addf %76, %78 : vector<128x92xf32>
    %c0_58 = arith.constant 0 : index
    %c0_59 = arith.constant 0 : index
    %80 = vector.load %arg23[%c0_58, %c0_59] : memref<128x92xf32, #tpu.memory_space<vmem>>, vector<128x92xf32>
    tpu.vector_store %arg23[%c0_58, %c0_59], %79 {strides = array<i32>} : memref<128x92xf32, #tpu.memory_space<vmem>>, vector<128x92xf32>,
    return
  }
  func.func @transform_0(%arg0: i32) -> (i32, i32) {
    %c0_i32 = arith.constant 0 : i32
    %c0_i32_0 = arith.constant 0 : i32
    return %arg0, %c0_i32 : i32, i32
  }
  func.func @transform_1(%arg0: i32) -> (i32, i32) {
    %c0_i32 = arith.constant 0 : i32
    %c0_i32_0 = arith.constant 0 : i32
    return %arg0, %c0_i32 : i32, i32
  }
  func.func @transform_2(%arg0: i32) -> (i32, i32) {
    %c0_i32 = arith.constant 0 : i32
    %c0_i32_0 = arith.constant 0 : i32
    %c0_i32_1 = arith.constant 0 : i32
    return %c0_i32, %c0_i32_0 : i32, i32
  }
  func.func @transform_3(%arg0: i32) -> (i32, i32) {
    %c0_i32 = arith.constant 0 : i32
    %c0_i32_0 = arith.constant 0 : i32
    %c0_i32_1 = arith.constant 0 : i32
    return %c0_i32, %c0_i32_0 : i32, i32
  }
  func.func @transform_4(%arg0: i32) -> (i32, i32) {
    %c0_i32 = arith.constant 0 : i32
    %c0_i32_0 = arith.constant 0 : i32
    %c0_i32_1 = arith.constant 0 : i32
    return %c0_i32, %c0_i32_0 : i32, i32
  }
  func.func @transform_5(%arg0: i32) -> (i32, i32) {
    %c0_i32 = arith.constant 0 : i32
    %c0_i32_0 = arith.constant 0 : i32
    %c0_i32_1 = arith.constant 0 : i32
    return %c0_i32, %c0_i32_0 : i32, i32
  }
  func.func @transform_6(%arg0: i32) -> (i32, i32) {
    %c0_i32 = arith.constant 0 : i32
    %c0_i32_0 = arith.constant 0 : i32
    %c0_i32_1 = arith.constant 0 : i32
    return %c0_i32, %c0_i32_0 : i32, i32
  }
  func.func @transform_7(%arg0: i32) -> (i32, i32) {
    %c0_i32 = arith.constant 0 : i32
    %c0_i32_0 = arith.constant 0 : i32
    %c0_i32_1 = arith.constant 0 : i32
    return %c0_i32, %c0_i32_0 : i32, i32
  }
  func.func @transform_8(%arg0: i32) -> (i32, i32) {
    %c0_i32 = arith.constant 0 : i32
    %c0_i32_0 = arith.constant 0 : i32
    %c0_i32_1 = arith.constant 0 : i32
    return %c0_i32, %c0_i32_0 : i32, i32
  }
  func.func @transform_9(%arg0: i32) -> (i32, i32) {
    %c0_i32 = arith.constant 0 : i32
    %c0_i32_0 = arith.constant 0 : i32
    %c0_i32_1 = arith.constant 0 : i32
    return %c0_i32, %c0_i32_0 : i32, i32
  }
  func.func @transform_10(%arg0: i32) -> (i32, i32) {
    %c0_i32 = arith.constant 0 : i32
    %c0_i32_0 = arith.constant 0 : i32
    %c0_i32_1 = arith.constant 0 : i32
    return %c0_i32, %c0_i32_0 : i32, i32
  }
  func.func @transform_11(%arg0: i32) -> (i32, i32) {
    %c0_i32 = arith.constant 0 : i32
    %c0_i32_0 = arith.constant 0 : i32
    %c0_i32_1 = arith.constant 0 : i32
    return %c0_i32, %c0_i32_0 : i32, i32
  }
  func.func @transform_12(%arg0: i32) -> (i32, i32) {
    %c0_i32 = arith.constant 0 : i32
    %c0_i32_0 = arith.constant 0 : i32
    %c0_i32_1 = arith.constant 0 : i32
    return %c0_i32, %c0_i32_0 : i32, i32
  }
  func.func @transform_13(%arg0: i32) -> (i32, i32) {
    %c0_i32 = arith.constant 0 : i32
    %c0_i32_0 = arith.constant 0 : i32
    %c0_i32_1 = arith.constant 0 : i32
    return %c0_i32, %c0_i32_0 : i32, i32
  }
  func.func @transform_14(%arg0: i32) -> (i32, i32) {
    %c0_i32 = arith.constant 0 : i32
    %c0_i32_0 = arith.constant 0 : i32
    %c0_i32_1 = arith.constant 0 : i32
    return %c0_i32, %c0_i32_0 : i32, i32
  }
  func.func @transform_15(%arg0: i32) -> (i32, i32) {
    %c0_i32 = arith.constant 0 : i32
    %c0_i32_0 = arith.constant 0 : i32
    %c0_i32_1 = arith.constant 0 : i32
    return %c0_i32, %c0_i32_0 : i32, i32
  }
  func.func @transform_16(%arg0: i32) -> (i32, i32) {
    %c0_i32 = arith.constant 0 : i32
    %c0_i32_0 = arith.constant 0 : i32
    %c0_i32_1 = arith.constant 0 : i32
    return %c0_i32, %c0_i32_0 : i32, i32
  }
  func.func @transform_17(%arg0: i32) -> (i32, i32) {
    %c0_i32 = arith.constant 0 : i32
    %c0_i32_0 = arith.constant 0 : i32
    %c0_i32_1 = arith.constant 0 : i32
    return %c0_i32, %c0_i32_0 : i32, i32
  }
  func.func @transform_18(%arg0: i32) -> (i32, i32) {
    %c0_i32 = arith.constant 0 : i32
    %c0_i32_0 = arith.constant 0 : i32
    %c0_i32_1 = arith.constant 0 : i32
    return %c0_i32, %c0_i32_0 : i32, i32
  }
  func.func @transform_19(%arg0: i32) -> (i32, i32) {
    %c0_i32 = arith.constant 0 : i32
    %c0_i32_0 = arith.constant 0 : i32
    %c0_i32_1 = arith.constant 0 : i32
    return %c0_i32, %c0_i32_0 : i32, i32
  }
  func.func @transform_20(%arg0: i32) -> (i32, i32) {
    %c0_i32 = arith.constant 0 : i32
    %c0_i32_0 = arith.constant 0 : i32
    %c0_i32_1 = arith.constant 0 : i32
    return %c0_i32, %c0_i32_0 : i32, i32
  }
  func.func @transform_21(%arg0: i32) -> (i32, i32) {
    %c0_i32 = arith.constant 0 : i32
    %c0_i32_0 = arith.constant 0 : i32
    return %arg0, %c0_i32 : i32, i32
  }
  func.func @transform_22(%arg0: i32) -> (i32, i32) {
    %c0_i32 = arith.constant 0 : i32
    %c0_i32_0 = arith.constant 0 : i32
    return %arg0, %c0_i32 : i32, i32
  }
}

</mosaic_0001>

<llo_original>
// kernel: tpu_custom_call.1
$region0: #{tpu_custom_call.1}
  #allocation0 [shape = 'u32[]', space=smem, size = 0x4, offset = 0x4, fixed_abs, tag = 'smem constant byte address 0x4 - core index']
  #allocation1 [shape = 'u32[144,128]{1,0:T(1,128)}', space=vmem, size = 0x12000, scoped, tag = 'internal scratch']
  %s0 = inlined_call_operand.vmem [shape: f32[128,8], index: 0, kind: input, shape index: {}]
  %s1 = inlined_call_operand.vmem [shape: bf16[128,32], index: 1, kind: input, shape index: {}]
  %s2 = inlined_call_operand.vmem [shape: bf16[8,8], index: 2, kind: input, shape index: {}]
  %s3 = inlined_call_operand.vmem [shape: f32[1,8], index: 3, kind: input, shape index: {}]
  %s4 = inlined_call_operand.vmem [shape: bf16[8,32], index: 4, kind: input, shape index: {}]
  %s5 = inlined_call_operand.vmem [shape: bf16[32,32], index: 5, kind: input, shape index: {}]
  %s6 = inlined_call_operand.vmem [shape: f32[1,32], index: 6, kind: input, shape index: {}]
  %s7 = inlined_call_operand.vmem [shape: bf16[32,32], index: 7, kind: input, shape index: {}]
  %s8 = inlined_call_operand.vmem [shape: f32[1,32], index: 8, kind: input, shape index: {}]
  %s9 = inlined_call_operand.vmem [shape: bf16[32,32], index: 9, kind: input, shape index: {}]
  %s10 = inlined_call_operand.vmem [shape: f32[1,32], index: 10, kind: input, shape index: {}]
  %s11 = inlined_call_operand.vmem [shape: bf16[32,32], index: 11, kind: input, shape index: {}]
  %s12 = inlined_call_operand.vmem [shape: f32[1,32], index: 12, kind: input, shape index: {}]
  %s13 = inlined_call_operand.vmem [shape: bf16[32,32], index: 13, kind: input, shape index: {}]
  %s14 = inlined_call_operand.vmem [shape: f32[1,32], index: 14, kind: input, shape index: {}]
  %s15 = inlined_call_operand.vmem [shape: bf16[32,32], index: 15, kind: input, shape index: {}]
  %s16 = inlined_call_operand.vmem [shape: f32[1,32], index: 16, kind: input, shape index: {}]
  %s17 = inlined_call_operand.vmem [shape: bf16[32,32], index: 17, kind: input, shape index: {}]
  %s18 = inlined_call_operand.vmem [shape: f32[1,32], index: 18, kind: input, shape index: {}]
  %s19 = inlined_call_operand.vmem [shape: bf16[32,92], index: 19, kind: input, shape index: {}]
  %s20 = inlined_call_operand.vmem [shape: f32[1,92], index: 20, kind: input, shape index: {}]
  %s21 = inlined_call_operand.vmem [shape: f32[128,8], index: 21, kind: output, shape index: {0}]
  %s22 = inlined_call_operand.vmem [shape: f32[128,92], index: 22, kind: output, shape index: {1}]
  %23 = xla_tuple %s21, %s22
  %s24 = sld [smem:[#allocation0]]
  $region102: #{tpu_custom_call.1} parent=0
    _
  %s26 = ssub.s32 1, %s24
  %s27 = scalar_select 0, %s26, %s24
  // Predicated region
  $region2: #{tpu_custom_call.1} parent=0 // pred_check
    _
  $region3: #{tpu_custom_call.1} parent=0 // pred_check_branch
    %29 = sbr.rel (0) target = $region5
  $region4: #{tpu_custom_call.1} parent=0 // pred_region
    _
  $region5: #{tpu_custom_call.1} parent=0 // pred_fallthru
    _
  // Predicated region
  $region6: #{tpu_custom_call.1} parent=0 // pred_check
    _
  $region7: #{tpu_custom_call.1} parent=0 // pred_check_branch
    %31 = sbr.rel (0) target = $region9
  $region8: #{tpu_custom_call.1} parent=0 // pred_region
    _
  $region9: #{tpu_custom_call.1} parent=0 // pred_fallthru
    _
  // Predicated region
  $region10: #{tpu_custom_call.1} parent=0 // pred_check
    _
  $region11: #{tpu_custom_call.1} parent=0 // pred_check_branch
    %33 = sbr.rel (0) target = $region13
  $region12: #{tpu_custom_call.1} parent=0 // pred_region
    _
  $region13: #{tpu_custom_call.1} parent=0 // pred_fallthru
    _
  // Predicated region
  $region14: #{tpu_custom_call.1} parent=0 // pred_check
    _
  $region15: #{tpu_custom_call.1} parent=0 // pred_check_branch
    %35 = sbr.rel (0) target = $region17
  $region16: #{tpu_custom_call.1} parent=0 // pred_region
    _
  $region17: #{tpu_custom_call.1} parent=0 // pred_fallthru
    _
  // Predicated region
  $region18: #{tpu_custom_call.1} parent=0 // pred_check
    _
  $region19: #{tpu_custom_call.1} parent=0 // pred_check_branch
    %37 = sbr.rel (0) target = $region21
  $region20: #{tpu_custom_call.1} parent=0 // pred_region
    _
  $region21: #{tpu_custom_call.1} parent=0 // pred_fallthru
    _
  // Predicated region
  $region22: #{tpu_custom_call.1} parent=0 // pred_check
    _
  $region23: #{tpu_custom_call.1} parent=0 // pred_check_branch
    %39 = sbr.rel (0) target = $region25
  $region24: #{tpu_custom_call.1} parent=0 // pred_region
    _
  $region25: #{tpu_custom_call.1} parent=0 // pred_fallthru
    _
  // Predicated region
  $region26: #{tpu_custom_call.1} parent=0 // pred_check
    _
  $region27: #{tpu_custom_call.1} parent=0 // pred_check_branch
    %41 = sbr.rel (0) target = $region29
  $region28: #{tpu_custom_call.1} parent=0 // pred_region
    _
  $region29: #{tpu_custom_call.1} parent=0 // pred_fallthru
    _
  // Predicated region
  $region30: #{tpu_custom_call.1} parent=0 // pred_check
    _
  $region31: #{tpu_custom_call.1} parent=0 // pred_check_branch
    %43 = sbr.rel (0) target = $region33
  $region32: #{tpu_custom_call.1} parent=0 // pred_region
    _
  $region33: #{tpu_custom_call.1} parent=0 // pred_fallthru
    _
  // Predicated region
  $region34: #{tpu_custom_call.1} parent=0 // pred_check
    _
  $region35: #{tpu_custom_call.1} parent=0 // pred_check_branch
    %45 = sbr.rel (0) target = $region37
  $region36: #{tpu_custom_call.1} parent=0 // pred_region
    _
  $region37: #{tpu_custom_call.1} parent=0 // pred_fallthru
    _
  // Predicated region
  $region38: #{tpu_custom_call.1} parent=0 // pred_check
    _
  $region39: #{tpu_custom_call.1} parent=0 // pred_check_branch
    %47 = sbr.rel (0) target = $region41
  $region40: #{tpu_custom_call.1} parent=0 // pred_region
    _
  $region41: #{tpu_custom_call.1} parent=0 // pred_fallthru
    _
  // Predicated region
  $region42: #{tpu_custom_call.1} parent=0 // pred_check
    _
  $region43: #{tpu_custom_call.1} parent=0 // pred_check_branch
    %49 = sbr.rel (0) target = $region45
  $region44: #{tpu_custom_call.1} parent=0 // pred_region
    _
  $region45: #{tpu_custom_call.1} parent=0 // pred_fallthru
    _
  // Predicated region
  $region46: #{tpu_custom_call.1} parent=0 // pred_check
    _
  $region47: #{tpu_custom_call.1} parent=0 // pred_check_branch
    %51 = sbr.rel (0) target = $region49
  $region48: #{tpu_custom_call.1} parent=0 // pred_region
    _
  $region49: #{tpu_custom_call.1} parent=0 // pred_fallthru
    _
  // Predicated region
  $region50: #{tpu_custom_call.1} parent=0 // pred_check
    _
  $region51: #{tpu_custom_call.1} parent=0 // pred_check_branch
    %53 = sbr.rel (0) target = $region53
  $region52: #{tpu_custom_call.1} parent=0 // pred_region
    _
  $region53: #{tpu_custom_call.1} parent=0 // pred_fallthru
    _
  // Predicated region
  $region54: #{tpu_custom_call.1} parent=0 // pred_check
    _
  $region55: #{tpu_custom_call.1} parent=0 // pred_check_branch
    %55 = sbr.rel (0) target = $region57
  $region56: #{tpu_custom_call.1} parent=0 // pred_region
    _
  $region57: #{tpu_custom_call.1} parent=0 // pred_fallthru
    _
  // Predicated region
  $region58: #{tpu_custom_call.1} parent=0 // pred_check
    _
  $region59: #{tpu_custom_call.1} parent=0 // pred_check_branch
    %57 = sbr.rel (0) target = $region61
  $region60: #{tpu_custom_call.1} parent=0 // pred_region
    _
  $region61: #{tpu_custom_call.1} parent=0 // pred_fallthru
    _
  // Predicated region
  $region62: #{tpu_custom_call.1} parent=0 // pred_check
    _
  $region63: #{tpu_custom_call.1} parent=0 // pred_check_branch
    %59 = sbr.rel (0) target = $region65
  $region64: #{tpu_custom_call.1} parent=0 // pred_region
    _
  $region65: #{tpu_custom_call.1} parent=0 // pred_fallthru
    _
  // Predicated region
  $region66: #{tpu_custom_call.1} parent=0 // pred_check
    _
  $region67: #{tpu_custom_call.1} parent=0 // pred_check_branch
    %61 = sbr.rel (0) target = $region69
  $region68: #{tpu_custom_call.1} parent=0 // pred_region
    _
  $region69: #{tpu_custom_call.1} parent=0 // pred_fallthru
    _
  // Predicated region
  $region70: #{tpu_custom_call.1} parent=0 // pred_check
    _
  $region71: #{tpu_custom_call.1} parent=0 // pred_check_branch
    %63 = sbr.rel (0) target = $region73
  $region72: #{tpu_custom_call.1} parent=0 // pred_region
    _
  $region73: #{tpu_custom_call.1} parent=0 // pred_fallthru
    _
  // Predicated region
  $region74: #{tpu_custom_call.1} parent=0 // pred_check
    _
  $region75: #{tpu_custom_call.1} parent=0 // pred_check_branch
    %65 = sbr.rel (0) target = $region77
  $region76: #{tpu_custom_call.1} parent=0 // pred_region
    _
  $region77: #{tpu_custom_call.1} parent=0 // pred_fallthru
    _
  // Predicated region
  $region78: #{tpu_custom_call.1} parent=0 // pred_check
    _
  $region79: #{tpu_custom_call.1} parent=0 // pred_check_branch
    %67 = sbr.rel (0) target = $region81
  $region80: #{tpu_custom_call.1} parent=0 // pred_region
    _
  $region81: #{tpu_custom_call.1} parent=0 // pred_fallthru
    _
  // Predicated region
  $region82: #{tpu_custom_call.1} parent=0 // pred_check
    _
  $region83: #{tpu_custom_call.1} parent=0 // pred_check_branch
    %69 = sbr.rel (0) target = $region85
  $region84: #{tpu_custom_call.1} parent=0 // pred_region
    _
  $region85: #{tpu_custom_call.1} parent=0 // pred_fallthru
    _
  %v71 = vld [vmem:[%s1] sm:$0xf]
  %v72 = vld [vmem:[%s1 + $0x4] sm:$0xf]
  %v73 = vld [vmem:[%s1 + $0x8] sm:$0xf]
  %v74 = vld [vmem:[%s1 + $0xc] sm:$0xf]
  %v75 = vld [vmem:[%s1 + $0x10] sm:$0xf]
  %v76 = vld [vmem:[%s1 + $0x14] sm:$0xf]
  %v77 = vld [vmem:[%s1 + $0x18] sm:$0xf]
  %v78 = vld [vmem:[%s1 + $0x1c] sm:$0xf]
  %v79 = vld [vmem:[%s1 + $0x20] sm:$0xf]
  %v80 = vld [vmem:[%s1 + $0x24] sm:$0xf]
  %v81 = vld [vmem:[%s1 + $0x28] sm:$0xf]
  %v82 = vld [vmem:[%s1 + $0x2c] sm:$0xf]
  %v83 = vld [vmem:[%s1 + $0x30] sm:$0xf]
  %v84 = vld [vmem:[%s1 + $0x34] sm:$0xf]
  %v85 = vld [vmem:[%s1 + $0x38] sm:$0xf]
  %v86 = vld [vmem:[%s1 + $0x3c] sm:$0xf]
  %v87 = vld [vmem:[%s0] sm:$0xff]
  %v88 = vld [vmem:[%s0 + $0x8] sm:$0xff]
  %v89 = vld [vmem:[%s0 + $0x10] sm:$0xff]
  %v90 = vld [vmem:[%s0 + $0x18] sm:$0xff]
  %v91 = vld [vmem:[%s0 + $0x20] sm:$0xff]
  %v92 = vld [vmem:[%s0 + $0x28] sm:$0xff]
  %v93 = vld [vmem:[%s0 + $0x30] sm:$0xff]
  %v94 = vld [vmem:[%s0 + $0x38] sm:$0xff]
  %v95 = vld [vmem:[%s0 + $0x40] sm:$0xff]
  %v96 = vld [vmem:[%s0 + $0x48] sm:$0xff]
  %v97 = vld [vmem:[%s0 + $0x50] sm:$0xff]
  %v98 = vld [vmem:[%s0 + $0x58] sm:$0xff]
  %v99 = vld [vmem:[%s0 + $0x60] sm:$0xff]
  %v100 = vld [vmem:[%s0 + $0x68] sm:$0xff]
  %v101 = vld [vmem:[%s0 + $0x70] sm:$0xff]
  %v102 = vld [vmem:[%s0 + $0x78] sm:$0xff]
  %v103 = vpack.c.bf16 %v88, %v87
  %v104 = vpack.c.bf16 %v90, %v89
  %v105 = vpack.c.bf16 %v92, %v91
  %v106 = vpack.c.bf16 %v94, %v93
  %v107 = vpack.c.bf16 %v96, %v95
  %v108 = vpack.c.bf16 %v98, %v97
  %v109 = vpack.c.bf16 %v100, %v99
  %v110 = vpack.c.bf16 %v102, %v101
  %v111 = vld [vmem:[%s2] sm:$0xf]
  %v112 = vld [vmem:[%s3] sm:$0x1]
  %v114 = vlaneseq
  %v115 = vshrl.u32 %v114, 7
  %v116 = vsub.s32 0, %v115
  %v117 = vrot.slane %v112, %v116
  %vm119 = vcmask 64512
  %v121 = vsel %vm119, %v103, 0
  %v124 = vsel %vm119, %v104, 0
  %v127 = vsel %vm119, %v105, 0
  %v130 = vsel %vm119, %v106, 0
  %v133 = vsel %vm119, %v107, 0
  %v136 = vsel %vm119, %v108, 0
  %v139 = vsel %vm119, %v109, 0
  %v142 = vsel %vm119, %v110, 0
  %vm144 = vcmask 1043456
  %v146 = vsel %vm144, %v111, 0
  %148 = vmatprep.subr.bf16.mxu0 0
  %149 = vmatpush1.bf16.msra.mxu0 %v146
  %150 = vmatprep.subr.bf16.mxu0 0
  %151 = vmatpush1.bf16.msra.mxu0 0
  %152 = vmatprep.subr.bf16.mxu0 0
  %153 = vmatpush1.bf16.msra.mxu0 0
  %154 = vmatprep.subr.bf16.mxu0 0
  %155 = vmatpush1.bf16.msra.mxu0 0
  %156 = vmatprep.subr.bf16.mxu0 0
  %157 = vmatpush1.bf16.msra.mxu0 0
  %158 = vmatprep.subr.bf16.mxu0 0
  %159 = vmatpush1.bf16.msra.mxu0 0
  %160 = vmatprep.subr.bf16.mxu0 0
  %161 = vmatpush1.bf16.msra.mxu0 0
  %162 = vmatprep.subr.bf16.mxu0 0
  %163 = vmatpush1.bf16.msra.mxu0 0
  %164 = vmatprep.subr.bf16.mxu0 0
  %165 = vmatpush1.bf16.msra.mxu0 0
  %166 = vmatprep.subr.bf16.mxu0 0
  %167 = vmatpush1.bf16.msra.mxu0 0
  %168 = vmatprep.subr.bf16.mxu0 0
  %169 = vmatpush1.bf16.msra.mxu0 0
  %170 = vmatprep.subr.bf16.mxu0 0
  %171 = vmatpush1.bf16.msra.mxu0 0
  %172 = vmatprep.subr.bf16.mxu0 0
  %173 = vmatpush1.bf16.msra.mxu0 0
  %174 = vmatprep.subr.bf16.mxu0 0
  %175 = vmatpush1.bf16.msra.mxu0 0
  %176 = vmatprep.subr.bf16.mxu0 0
  %177 = vmatpush1.bf16.msra.mxu0 0
  %178 = vmatprep.subr.bf16.mxu0 0
  %179 = vmatpush1.bf16.msra.mxu0 0
  %180 = vmatprep.mubr.bf16.mxu0 0
  %181 = vmatmul.mubr.bf16.gmra.mrb[0].mxu0 %v121
  %v182 = vpop.f32.mrb[0].mxu0
  %v183 = vadd.f32 %v117, %v182
  %v184 = vpop.f32.mrb[0].mxu0
  %v185 = vpop.f32.mrb[0].mxu0
  %v186 = vadd.f32 %v117, %v185
  %v187 = vpop.f32.mrb[0].mxu0
  %188 = vmatprep.mubr.bf16.mxu0 0
  %189 = vmatmul.mubr.bf16.gmra.mrb[0].mxu0 %v124
  %v190 = vpop.f32.mrb[0].mxu0
  %v191 = vadd.f32 %v117, %v190
  %v192 = vpop.f32.mrb[0].mxu0
  %v193 = vpop.f32.mrb[0].mxu0
  %v194 = vadd.f32 %v117, %v193
  %v195 = vpop.f32.mrb[0].mxu0
  %196 = vmatprep.mubr.bf16.mxu0 0
  %197 = vmatmul.mubr.bf16.gmra.mrb[0].mxu0 %v127
  %v198 = vpop.f32.mrb[0].mxu0
  %v199 = vadd.f32 %v117, %v198
  %v200 = vpop.f32.mrb[0].mxu0
  %v201 = vpop.f32.mrb[0].mxu0
  %v202 = vadd.f32 %v117, %v201
  %v203 = vpop.f32.mrb[0].mxu0
  %204 = vmatprep.mubr.bf16.mxu0 0
  %205 = vmatmul.mubr.bf16.gmra.mrb[0].mxu0 %v130
  %v206 = vpop.f32.mrb[0].mxu0
  %v207 = vadd.f32 %v117, %v206
  %v208 = vpop.f32.mrb[0].mxu0
  %v209 = vpop.f32.mrb[0].mxu0
  %v210 = vadd.f32 %v117, %v209
  %v211 = vpop.f32.mrb[0].mxu0
  %212 = vmatprep.mubr.bf16.mxu0 0
  %213 = vmatmul.mubr.bf16.gmra.mrb[0].mxu0 %v133
  %v214 = vpop.f32.mrb[0].mxu0
  %v215 = vadd.f32 %v117, %v214
  %v216 = vpop.f32.mrb[0].mxu0
  %v217 = vpop.f32.mrb[0].mxu0
  %v218 = vadd.f32 %v117, %v217
  %v219 = vpop.f32.mrb[0].mxu0
  %220 = vmatprep.mubr.bf16.mxu0 0
  %221 = vmatmul.mubr.bf16.gmra.mrb[0].mxu0 %v136
  %v222 = vpop.f32.mrb[0].mxu0
  %v223 = vadd.f32 %v117, %v222
  %v224 = vpop.f32.mrb[0].mxu0
  %v225 = vpop.f32.mrb[0].mxu0
  %v226 = vadd.f32 %v117, %v225
  %v227 = vpop.f32.mrb[0].mxu0
  %228 = vmatprep.mubr.bf16.mxu0 0
  %229 = vmatmul.mubr.bf16.gmra.mrb[0].mxu0 %v139
  %v230 = vpop.f32.mrb[0].mxu0
  %v231 = vadd.f32 %v117, %v230
  %v232 = vpop.f32.mrb[0].mxu0
  %v233 = vpop.f32.mrb[0].mxu0
  %v234 = vadd.f32 %v117, %v233
  %v235 = vpop.f32.mrb[0].mxu0
  %236 = vmatprep.mubr.bf16.mxu0 0
  %237 = vmatmul.mubr.bf16.gmra.mrb[0].mxu0 %v142
  %v238 = vpop.f32.mrb[0].mxu0
  %v239 = vadd.f32 %v117, %v238
  %v240 = vpop.f32.mrb[0].mxu0
  %v241 = vpop.f32.mrb[0].mxu0
  %v242 = vadd.f32 %v117, %v241
  %v243 = vpop.f32.mrb[0].mxu0
  %244 = vdwg.mxu0
  %245 = vst.msk [vmem:[%s21] sm:$0xff] %vm119, %v183
  %246 = vst.msk [vmem:[%s21 + $0x8] sm:$0xff] %vm119, %v186
  %247 = vst.msk [vmem:[%s21 + $0x10] sm:$0xff] %vm119, %v191
  %248 = vst.msk [vmem:[%s21 + $0x18] sm:$0xff] %vm119, %v194
  %249 = vst.msk [vmem:[%s21 + $0x20] sm:$0xff] %vm119, %v199
  %250 = vst.msk [vmem:[%s21 + $0x28] sm:$0xff] %vm119, %v202
  %251 = vst.msk [vmem:[%s21 + $0x30] sm:$0xff] %vm119, %v207
  %252 = vst.msk [vmem:[%s21 + $0x38] sm:$0xff] %vm119, %v210
  %253 = vst.msk [vmem:[%s21 + $0x40] sm:$0xff] %vm119, %v215
  %254 = vst.msk [vmem:[%s21 + $0x48] sm:$0xff] %vm119, %v218
  %255 = vst.msk [vmem:[%s21 + $0x50] sm:$0xff] %vm119, %v223
  %256 = vst.msk [vmem:[%s21 + $0x58] sm:$0xff] %vm119, %v226
  %257 = vst.msk [vmem:[%s21 + $0x60] sm:$0xff] %vm119, %v231
  %258 = vst.msk [vmem:[%s21 + $0x68] sm:$0xff] %vm119, %v234
  %259 = vst.msk [vmem:[%s21 + $0x70] sm:$0xff] %vm119, %v239
  %260 = vst.msk [vmem:[%s21 + $0x78] sm:$0xff] %vm119, %v242
  %v261 = vpack.c.bf16 %v186, %v183
  %v262 = vpack.c.bf16 %v194, %v191
  %v263 = vpack.c.bf16 %v202, %v199
  %v264 = vpack.c.bf16 %v210, %v207
  %v265 = vpack.c.bf16 %v218, %v215
  %v266 = vpack.c.bf16 %v226, %v223
  %v267 = vpack.c.bf16 %v234, %v231
  %v268 = vpack.c.bf16 %v242, %v239
  %v269 = vld [vmem:[%s4] sm:$0xf]
  %v270 = vld [vmem:[%s5] sm:$0xf]
  %v271 = vld [vmem:[%s5 + $0x4] sm:$0xf]
  %v272 = vld [vmem:[%s5 + $0x8] sm:$0xf]
  %v273 = vld [vmem:[%s5 + $0xc] sm:$0xf]
  %v290 = vunpack.c.l.b16 %v71
  %v291 = vunpack.c.l.b16 %v72
  %v292 = vunpack.c.l.b16 %v73
  %v293 = vunpack.c.l.b16 %v74
  %v294 = vunpack.c.l.b16 %v75
  %v295 = vunpack.c.l.b16 %v76
  %v296 = vunpack.c.l.b16 %v77
  %v297 = vunpack.c.l.b16 %v78
  %v298 = vunpack.c.l.b16 %v79
  %v299 = vunpack.c.l.b16 %v80
  %v300 = vunpack.c.l.b16 %v81
  %v301 = vunpack.c.l.b16 %v82
  %v302 = vunpack.c.l.b16 %v83
  %v303 = vunpack.c.l.b16 %v84
  %v304 = vunpack.c.l.b16 %v85
  %v305 = vunpack.c.l.b16 %v86
  %v306 = vpack.c.b16 %v291, %v290
  %v307 = vpack.c.b16 %v293, %v292
  %v308 = vpack.c.b16 %v295, %v294
  %v309 = vpack.c.b16 %v297, %v296
  %v310 = vpack.c.b16 %v299, %v298
  %v311 = vpack.c.b16 %v301, %v300
  %v312 = vpack.c.b16 %v303, %v302
  %v313 = vpack.c.b16 %v305, %v304
  %v318 = vunpack.c.l.b16 %v270
  %v319 = vunpack.c.l.b16 %v271
  %v320 = vunpack.c.l.b16 %v272
  %v321 = vunpack.c.l.b16 %v273
  %v322 = vpack.c.b16 %v319, %v318
  %v323 = vpack.c.b16 %v321, %v320
  %vm326 = vcmask 261120
  %v328 = vsel %vm326, %v306, 0
  %v331 = vsel %vm326, %v307, 0
  %v334 = vsel %vm326, %v308, 0
  %v337 = vsel %vm326, %v309, 0
  %v340 = vsel %vm326, %v310, 0
  %v343 = vsel %vm326, %v311, 0
  %v346 = vsel %vm326, %v312, 0
  %v349 = vsel %vm326, %v313, 0
  %351 = vmatprep.subr.bf16.mxu0 0
  %352 = vmatpush1.bf16.msra.mxu0 %v322
  %353 = vmatprep.subr.bf16.mxu0 0
  %354 = vmatpush1.bf16.msra.mxu0 %v323
  %355 = vmatprep.subr.bf16.mxu0 0
  %356 = vmatpush1.bf16.msra.mxu0 0
  %357 = vmatprep.subr.bf16.mxu0 0
  %358 = vmatpush1.bf16.msra.mxu0 0
  %359 = vmatprep.subr.bf16.mxu0 0
  %360 = vmatpush1.bf16.msra.mxu0 0
  %361 = vmatprep.subr.bf16.mxu0 0
  %362 = vmatpush1.bf16.msra.mxu0 0
  %363 = vmatprep.subr.bf16.mxu0 0
  %364 = vmatpush1.bf16.msra.mxu0 0
  %365 = vmatprep.subr.bf16.mxu0 0
  %366 = vmatpush1.bf16.msra.mxu0 0
  %367 = vmatprep.subr.bf16.mxu0 0
  %368 = vmatpush1.bf16.msra.mxu0 0
  %369 = vmatprep.subr.bf16.mxu0 0
  %370 = vmatpush1.bf16.msra.mxu0 0
  %371 = vmatprep.subr.bf16.mxu0 0
  %372 = vmatpush1.bf16.msra.mxu0 0
  %373 = vmatprep.subr.bf16.mxu0 0
  %374 = vmatpush1.bf16.msra.mxu0 0
  %375 = vmatprep.subr.bf16.mxu0 0
  %376 = vmatpush1.bf16.msra.mxu0 0
  %377 = vmatprep.subr.bf16.mxu0 0
  %378 = vmatpush1.bf16.msra.mxu0 0
  %379 = vmatprep.subr.bf16.mxu0 0
  %380 = vmatpush1.bf16.msra.mxu0 0
  %381 = vmatprep.subr.bf16.mxu0 0
  %382 = vmatpush1.bf16.msra.mxu0 0
  %383 = vmatprep.mubr.bf16.mxu0 0
  %384 = vmatmul.mubr.bf16.gmra.mrb[0].mxu0 %v328
  %v385 = vpop.f32.mrb[0].mxu0
  %v386 = vadd.f32 0.0, %v385
  %v387 = vpop.f32.mrb[0].mxu0
  %v388 = vpop.f32.mrb[0].mxu0
  %v389 = vadd.f32 0.0, %v388
  %v390 = vpop.f32.mrb[0].mxu0
  %391 = vmatprep.mubr.bf16.mxu0 0
  %392 = vmatmul.mubr.bf16.gmra.mrb[0].mxu0 %v331
  %v393 = vpop.f32.mrb[0].mxu0
  %v394 = vadd.f32 0.0, %v393
  %v395 = vpop.f32.mrb[0].mxu0
  %v396 = vpop.f32.mrb[0].mxu0
  %v397 = vadd.f32 0.0, %v396
  %v398 = vpop.f32.mrb[0].mxu0
  %399 = vmatprep.mubr.bf16.mxu0 0
  %400 = vmatmul.mubr.bf16.gmra.mrb[0].mxu0 %v334
  %v401 = vpop.f32.mrb[0].mxu0
  %v402 = vadd.f32 0.0, %v401
  %v403 = vpop.f32.mrb[0].mxu0
  %v404 = vpop.f32.mrb[0].mxu0
  %v405 = vadd.f32 0.0, %v404
  %v406 = vpop.f32.mrb[0].mxu0
  %407 = vmatprep.mubr.bf16.mxu0 0
  %408 = vmatmul.mubr.bf16.gmra.mrb[0].mxu0 %v337
  %v409 = vpop.f32.mrb[0].mxu0
  %v410 = vadd.f32 0.0, %v409
  %v411 = vpop.f32.mrb[0].mxu0
  %v412 = vpop.f32.mrb[0].mxu0
  %v413 = vadd.f32 0.0, %v412
  %v414 = vpop.f32.mrb[0].mxu0
  %415 = vmatprep.mubr.bf16.mxu0 0
  %416 = vmatmul.mubr.bf16.gmra.mrb[0].mxu0 %v340
  %v417 = vpop.f32.mrb[0].mxu0
  %v418 = vadd.f32 0.0, %v417
  %v419 = vpop.f32.mrb[0].mxu0
  %v420 = vpop.f32.mrb[0].mxu0
  %v421 = vadd.f32 0.0, %v420
  %v422 = vpop.f32.mrb[0].mxu0
  %423 = vmatprep.mubr.bf16.mxu0 0
  %424 = vmatmul.mubr.bf16.gmra.mrb[0].mxu0 %v343
  %v425 = vpop.f32.mrb[0].mxu0
  %v426 = vadd.f32 0.0, %v425
  %v427 = vpop.f32.mrb[0].mxu0
  %v428 = vpop.f32.mrb[0].mxu0
  %v429 = vadd.f32 0.0, %v428
  %v430 = vpop.f32.mrb[0].mxu0
  %431 = vmatprep.mubr.bf16.mxu0 0
  %432 = vmatmul.mubr.bf16.gmra.mrb[0].mxu0 %v346
  %v433 = vpop.f32.mrb[0].mxu0
  %v434 = vadd.f32 0.0, %v433
  %v435 = vpop.f32.mrb[0].mxu0
  %v436 = vpop.f32.mrb[0].mxu0
  %v437 = vadd.f32 0.0, %v436
  %v438 = vpop.f32.mrb[0].mxu0
  %439 = vmatprep.mubr.bf16.mxu0 0
  %440 = vmatmul.mubr.bf16.gmra.mrb[0].mxu0 %v349
  %v441 = vpop.f32.mrb[0].mxu0
  %v442 = vadd.f32 0.0, %v441
  %v443 = vpop.f32.mrb[0].mxu0
  %v444 = vpop.f32.mrb[0].mxu0
  %v445 = vadd.f32 0.0, %v444
  %v446 = vpop.f32.mrb[0].mxu0
  %447 = vdwg.mxu0
  %v449 = vsel %vm119, %v261, 0
  %v452 = vsel %vm119, %v262, 0
  %v455 = vsel %vm119, %v263, 0
  %v458 = vsel %vm119, %v264, 0
  %v461 = vsel %vm119, %v265, 0
  %v464 = vsel %vm119, %v266, 0
  %v467 = vsel %vm119, %v267, 0
  %v470 = vsel %vm119, %v268, 0
  %v473 = vsel %vm144, %v269, 0
  %475 = vmatprep.subr.bf16.mxu0 0
  %476 = vmatpush1.bf16.msra.mxu0 %v473
  %477 = vmatprep.subr.bf16.mxu0 0
  %478 = vmatpush1.bf16.msra.mxu0 0
  %479 = vmatprep.subr.bf16.mxu0 0
  %480 = vmatpush1.bf16.msra.mxu0 0
  %481 = vmatprep.subr.bf16.mxu0 0
  %482 = vmatpush1.bf16.msra.mxu0 0
  %483 = vmatprep.subr.bf16.mxu0 0
  %484 = vmatpush1.bf16.msra.mxu0 0
  %485 = vmatprep.subr.bf16.mxu0 0
  %486 = vmatpush1.bf16.msra.mxu0 0
  %487 = vmatprep.subr.bf16.mxu0 0
  %488 = vmatpush1.bf16.msra.mxu0 0
  %489 = vmatprep.subr.bf16.mxu0 0
  %490 = vmatpush1.bf16.msra.mxu0 0
  %491 = vmatprep.subr.bf16.mxu0 0
  %492 = vmatpush1.bf16.msra.mxu0 0
  %493 = vmatprep.subr.bf16.mxu0 0
  %494 = vmatpush1.bf16.msra.mxu0 0
  %495 = vmatprep.subr.bf16.mxu0 0
  %496 = vmatpush1.bf16.msra.mxu0 0
  %497 = vmatprep.subr.bf16.mxu0 0
  %498 = vmatpush1.bf16.msra.mxu0 0
  %499 = vmatprep.subr.bf16.mxu0 0
  %500 = vmatpush1.bf16.msra.mxu0 0
  %501 = vmatprep.subr.bf16.mxu0 0
  %502 = vmatpush1.bf16.msra.mxu0 0
  %503 = vmatprep.subr.bf16.mxu0 0
  %504 = vmatpush1.bf16.msra.mxu0 0
  %505 = vmatprep.subr.bf16.mxu0 0
  %506 = vmatpush1.bf16.msra.mxu0 0
  %507 = vmatprep.mubr.bf16.mxu0 0
  %508 = vmatmul.mubr.bf16.gmra.mrb[0].mxu0 %v449
  %v509 = vpop.f32.mrb[0].mxu0
  %v510 = vadd.f32 %v386, %v509
  %v511 = vpop.f32.mrb[0].mxu0
  %v512 = vpop.f32.mrb[0].mxu0
  %v513 = vadd.f32 %v389, %v512
  %v514 = vpop.f32.mrb[0].mxu0
  %515 = vmatprep.mubr.bf16.mxu0 0
  %516 = vmatmul.mubr.bf16.gmra.mrb[0].mxu0 %v452
  %v517 = vpop.f32.mrb[0].mxu0
  %v518 = vadd.f32 %v394, %v517
  %v519 = vpop.f32.mrb[0].mxu0
  %v520 = vpop.f32.mrb[0].mxu0
  %v521 = vadd.f32 %v397, %v520
  %v522 = vpop.f32.mrb[0].mxu0
  %523 = vmatprep.mubr.bf16.mxu0 0
  %524 = vmatmul.mubr.bf16.gmra.mrb[0].mxu0 %v455
  %v525 = vpop.f32.mrb[0].mxu0
  %v526 = vadd.f32 %v402, %v525
  %v527 = vpop.f32.mrb[0].mxu0
  %v528 = vpop.f32.mrb[0].mxu0
  %v529 = vadd.f32 %v405, %v528
  %v530 = vpop.f32.mrb[0].mxu0
  %531 = vmatprep.mubr.bf16.mxu0 0
  %532 = vmatmul.mubr.bf16.gmra.mrb[0].mxu0 %v458
  %v533 = vpop.f32.mrb[0].mxu0
  %v534 = vadd.f32 %v410, %v533
  %v535 = vpop.f32.mrb[0].mxu0
  %v536 = vpop.f32.mrb[0].mxu0
  %v537 = vadd.f32 %v413, %v536
  %v538 = vpop.f32.mrb[0].mxu0
  %539 = vmatprep.mubr.bf16.mxu0 0
  %540 = vmatmul.mubr.bf16.gmra.mrb[0].mxu0 %v461
  %v541 = vpop.f32.mrb[0].mxu0
  %v542 = vadd.f32 %v418, %v541
  %v543 = vpop.f32.mrb[0].mxu0
  %v544 = vpop.f32.mrb[0].mxu0
  %v545 = vadd.f32 %v421, %v544
  %v546 = vpop.f32.mrb[0].mxu0
  %547 = vmatprep.mubr.bf16.mxu0 0
  %548 = vmatmul.mubr.bf16.gmra.mrb[0].mxu0 %v464
  %v549 = vpop.f32.mrb[0].mxu0
  %v550 = vadd.f32 %v426, %v549
  %v551 = vpop.f32.mrb[0].mxu0
  %v552 = vpop.f32.mrb[0].mxu0
  %v553 = vadd.f32 %v429, %v552
  %v554 = vpop.f32.mrb[0].mxu0
  %555 = vmatprep.mubr.bf16.mxu0 0
  %556 = vmatmul.mubr.bf16.gmra.mrb[0].mxu0 %v467
  %v557 = vpop.f32.mrb[0].mxu0
  %v558 = vadd.f32 %v434, %v557
  %v559 = vpop.f32.mrb[0].mxu0
  %v560 = vpop.f32.mrb[0].mxu0
  %v561 = vadd.f32 %v437, %v560
  %v562 = vpop.f32.mrb[0].mxu0
  %563 = vmatprep.mubr.bf16.mxu0 0
  %564 = vmatmul.mubr.bf16.gmra.mrb[0].mxu0 %v470
  %v565 = vpop.f32.mrb[0].mxu0
  %v566 = vadd.f32 %v442, %v565
  %v567 = vpop.f32.mrb[0].mxu0
  %v568 = vpop.f32.mrb[0].mxu0
  %v569 = vadd.f32 %v445, %v568
  %v570 = vpop.f32.mrb[0].mxu0
  %571 = vdwg.mxu0
  %v572 = vld [vmem:[%s6] sm:$0x1]
  %v574 = vlaneseq
  %v575 = vshrl.u32 %v574, 7
  %v576 = vsub.s32 0, %v575
  %v577 = vrot.slane %v572, %v576
  %v579 = vadd.f32 %v510, %v577
  %v580 = vadd.f32 %v513, %v577
  %v581 = vadd.f32 %v518, %v577
  %v582 = vadd.f32 %v521, %v577
  %v583 = vadd.f32 %v526, %v577
  %v584 = vadd.f32 %v529, %v577
  %v585 = vadd.f32 %v534, %v577
  %v586 = vadd.f32 %v537, %v577
  %v587 = vadd.f32 %v542, %v577
  %v588 = vadd.f32 %v545, %v577
  %v589 = vadd.f32 %v550, %v577
  %v590 = vadd.f32 %v553, %v577
  %v591 = vadd.f32 %v558, %v577
  %v592 = vadd.f32 %v561, %v577
  %v593 = vadd.f32 %v566, %v577
  %v594 = vadd.f32 %v569, %v577
  %v595 = vmax.f32 %v579, 0.0
  %v596 = vmax.f32 %v580, 0.0
  %v597 = vmax.f32 %v581, 0.0
  %v598 = vmax.f32 %v582, 0.0
  %v599 = vmax.f32 %v583, 0.0
  %v600 = vmax.f32 %v584, 0.0
  %v601 = vmax.f32 %v585, 0.0
  %v602 = vmax.f32 %v586, 0.0
  %v603 = vmax.f32 %v587, 0.0
  %v604 = vmax.f32 %v588, 0.0
  %v605 = vmax.f32 %v589, 0.0
  %v606 = vmax.f32 %v590, 0.0
  %v607 = vmax.f32 %v591, 0.0
  %v608 = vmax.f32 %v592, 0.0
  %v609 = vmax.f32 %v593, 0.0
  %v610 = vmax.f32 %v594, 0.0
  %v611 = vpack.c.bf16 %v596, %v595
  %v612 = vpack.c.bf16 %v598, %v597
  %v613 = vpack.c.bf16 %v600, %v599
  %v614 = vpack.c.bf16 %v602, %v601
  %v615 = vpack.c.bf16 %v604, %v603
  %v616 = vpack.c.bf16 %v606, %v605
  %v617 = vpack.c.bf16 %v608, %v607
  %v618 = vpack.c.bf16 %v610, %v609
  %v619 = vld [vmem:[%s7] sm:$0xf]
  %v620 = vld [vmem:[%s7 + $0x4] sm:$0xf]
  %v621 = vld [vmem:[%s7 + $0x8] sm:$0xf]
  %v622 = vld [vmem:[%s7 + $0xc] sm:$0xf]
  %v623 = vld [vmem:[%s8] sm:$0x1]
  %v625 = vlaneseq
  %v626 = vshrl.u32 %v625, 7
  %v627 = vsub.s32 0, %v626
  %v628 = vrot.slane %v623, %v627
  %v634 = vunpack.c.l.b16 %v619
  %v635 = vunpack.c.l.b16 %v620
  %v636 = vunpack.c.l.b16 %v621
  %v637 = vunpack.c.l.b16 %v622
  %v638 = vpack.c.b16 %v635, %v634
  %v639 = vpack.c.b16 %v637, %v636
  %v643 = vsel %vm326, %v611, 0
  %v646 = vsel %vm326, %v612, 0
  %v649 = vsel %vm326, %v613, 0
  %v652 = vsel %vm326, %v614, 0
  %v655 = vsel %vm326, %v615, 0
  %v658 = vsel %vm326, %v616, 0
  %v661 = vsel %vm326, %v617, 0
  %v664 = vsel %vm326, %v618, 0
  %666 = vmatprep.subr.bf16.mxu0 0
  %667 = vmatpush1.bf16.msra.mxu0 %v638
  %668 = vmatprep.subr.bf16.mxu0 0
  %669 = vmatpush1.bf16.msra.mxu0 %v639
  %670 = vmatprep.subr.bf16.mxu0 0
  %671 = vmatpush1.bf16.msra.mxu0 0
  %672 = vmatprep.subr.bf16.mxu0 0
  %673 = vmatpush1.bf16.msra.mxu0 0
  %674 = vmatprep.subr.bf16.mxu0 0
  %675 = vmatpush1.bf16.msra.mxu0 0
  %676 = vmatprep.subr.bf16.mxu0 0
  %677 = vmatpush1.bf16.msra.mxu0 0
  %678 = vmatprep.subr.bf16.mxu0 0
  %679 = vmatpush1.bf16.msra.mxu0 0
  %680 = vmatprep.subr.bf16.mxu0 0
  %681 = vmatpush1.bf16.msra.mxu0 0
  %682 = vmatprep.subr.bf16.mxu0 0
  %683 = vmatpush1.bf16.msra.mxu0 0
  %684 = vmatprep.subr.bf16.mxu0 0
  %685 = vmatpush1.bf16.msra.mxu0 0
  %686 = vmatprep.subr.bf16.mxu0 0
  %687 = vmatpush1.bf16.msra.mxu0 0
  %688 = vmatprep.subr.bf16.mxu0 0
  %689 = vmatpush1.bf16.msra.mxu0 0
  %690 = vmatprep.subr.bf16.mxu0 0
  %691 = vmatpush1.bf16.msra.mxu0 0
  %692 = vmatprep.subr.bf16.mxu0 0
  %693 = vmatpush1.bf16.msra.mxu0 0
  %694 = vmatprep.subr.bf16.mxu0 0
  %695 = vmatpush1.bf16.msra.mxu0 0
  %696 = vmatprep.subr.bf16.mxu0 0
  %697 = vmatpush1.bf16.msra.mxu0 0
  %698 = vmatprep.mubr.bf16.mxu0 0
  %699 = vmatmul.mubr.bf16.gmra.mrb[0].mxu0 %v643
  %v700 = vpop.f32.mrb[0].mxu0
  %v701 = vadd.f32 %v628, %v700
  %v702 = vpop.f32.mrb[0].mxu0
  %v703 = vpop.f32.mrb[0].mxu0
  %v704 = vadd.f32 %v628, %v703
  %v705 = vpop.f32.mrb[0].mxu0
  %706 = vmatprep.mubr.bf16.mxu0 0
  %707 = vmatmul.mubr.bf16.gmra.mrb[0].mxu0 %v646
  %v708 = vpop.f32.mrb[0].mxu0
  %v709 = vadd.f32 %v628, %v708
  %v710 = vpop.f32.mrb[0].mxu0
  %v711 = vpop.f32.mrb[0].mxu0
  %v712 = vadd.f32 %v628, %v711
  %v713 = vpop.f32.mrb[0].mxu0
  %714 = vmatprep.mubr.bf16.mxu0 0
  %715 = vmatmul.mubr.bf16.gmra.mrb[0].mxu0 %v649
  %v716 = vpop.f32.mrb[0].mxu0
  %v717 = vadd.f32 %v628, %v716
  %v718 = vpop.f32.mrb[0].mxu0
  %v719 = vpop.f32.mrb[0].mxu0
  %v720 = vadd.f32 %v628, %v719
  %v721 = vpop.f32.mrb[0].mxu0
  %722 = vmatprep.mubr.bf16.mxu0 0
  %723 = vmatmul.mubr.bf16.gmra.mrb[0].mxu0 %v652
  %v724 = vpop.f32.mrb[0].mxu0
  %v725 = vadd.f32 %v628, %v724
  %v726 = vpop.f32.mrb[0].mxu0
  %v727 = vpop.f32.mrb[0].mxu0
  %v728 = vadd.f32 %v628, %v727
  %v729 = vpop.f32.mrb[0].mxu0
  %730 = vmatprep.mubr.bf16.mxu0 0
  %731 = vmatmul.mubr.bf16.gmra.mrb[0].mxu0 %v655
  %v732 = vpop.f32.mrb[0].mxu0
  %v733 = vadd.f32 %v628, %v732
  %v734 = vpop.f32.mrb[0].mxu0
  %v735 = vpop.f32.mrb[0].mxu0
  %v736 = vadd.f32 %v628, %v735
  %v737 = vpop.f32.mrb[0].mxu0
  %738 = vmatprep.mubr.bf16.mxu0 0
  %739 = vmatmul.mubr.bf16.gmra.mrb[0].mxu0 %v658
  %v740 = vpop.f32.mrb[0].mxu0
  %v741 = vadd.f32 %v628, %v740
  %v742 = vpop.f32.mrb[0].mxu0
  %v743 = vpop.f32.mrb[0].mxu0
  %v744 = vadd.f32 %v628, %v743
  %v745 = vpop.f32.mrb[0].mxu0
  %746 = vmatprep.mubr.bf16.mxu0 0
  %747 = vmatmul.mubr.bf16.gmra.mrb[0].mxu0 %v661
  %v748 = vpop.f32.mrb[0].mxu0
  %v749 = vadd.f32 %v628, %v748
  %v750 = vpop.f32.mrb[0].mxu0
  %v751 = vpop.f32.mrb[0].mxu0
  %v752 = vadd.f32 %v628, %v751
  %v753 = vpop.f32.mrb[0].mxu0
  %754 = vmatprep.mubr.bf16.mxu0 0
  %755 = vmatmul.mubr.bf16.gmra.mrb[0].mxu0 %v664
  %v756 = vpop.f32.mrb[0].mxu0
  %v757 = vadd.f32 %v628, %v756
  %v758 = vpop.f32.mrb[0].mxu0
  %v759 = vpop.f32.mrb[0].mxu0
  %v760 = vadd.f32 %v628, %v759
  %v761 = vpop.f32.mrb[0].mxu0
  %762 = vdwg.mxu0
  %v763 = vmax.f32 %v701, 0.0
  %v764 = vmax.f32 %v704, 0.0
  %v765 = vmax.f32 %v709, 0.0
  %v766 = vmax.f32 %v712, 0.0
  %v767 = vmax.f32 %v717, 0.0
  %v768 = vmax.f32 %v720, 0.0
  %v769 = vmax.f32 %v725, 0.0
  %v770 = vmax.f32 %v728, 0.0
  %v771 = vmax.f32 %v733, 0.0
  %v772 = vmax.f32 %v736, 0.0
  %v773 = vmax.f32 %v741, 0.0
  %v774 = vmax.f32 %v744, 0.0
  %v775 = vmax.f32 %v749, 0.0
  %v776 = vmax.f32 %v752, 0.0
  %v777 = vmax.f32 %v757, 0.0
  %v778 = vmax.f32 %v760, 0.0
  %v779 = vpack.c.bf16 %v764, %v763
  %v780 = vpack.c.bf16 %v766, %v765
  %v781 = vpack.c.bf16 %v768, %v767
  %v782 = vpack.c.bf16 %v770, %v769
  %v783 = vpack.c.bf16 %v772, %v771
  %v784 = vpack.c.bf16 %v774, %v773
  %v785 = vpack.c.bf16 %v776, %v775
  %v786 = vpack.c.bf16 %v778, %v777
  %v787 = vld [vmem:[%s9] sm:$0xf]
  %v788 = vld [vmem:[%s9 + $0x4] sm:$0xf]
  %v789 = vld [vmem:[%s9 + $0x8] sm:$0xf]
  %v790 = vld [vmem:[%s9 + $0xc] sm:$0xf]
  %v791 = vld [vmem:[%s10] sm:$0x1]
  %v793 = vlaneseq
  %v794 = vshrl.u32 %v793, 7
  %v795 = vsub.s32 0, %v794
  %v796 = vrot.slane %v791, %v795
  %v802 = vunpack.c.l.b16 %v787
  %v803 = vunpack.c.l.b16 %v788
  %v804 = vunpack.c.l.b16 %v789
  %v805 = vunpack.c.l.b16 %v790
  %v806 = vpack.c.b16 %v803, %v802
  %v807 = vpack.c.b16 %v805, %v804
  %v811 = vsel %vm326, %v779, 0
  %v814 = vsel %vm326, %v780, 0
  %v817 = vsel %vm326, %v781, 0
  %v820 = vsel %vm326, %v782, 0
  %v823 = vsel %vm326, %v783, 0
  %v826 = vsel %vm326, %v784, 0
  %v829 = vsel %vm326, %v785, 0
  %v832 = vsel %vm326, %v786, 0
  %834 = vmatprep.subr.bf16.mxu0 0
  %835 = vmatpush1.bf16.msra.mxu0 %v806
  %836 = vmatprep.subr.bf16.mxu0 0
  %837 = vmatpush1.bf16.msra.mxu0 %v807
  %838 = vmatprep.subr.bf16.mxu0 0
  %839 = vmatpush1.bf16.msra.mxu0 0
  %840 = vmatprep.subr.bf16.mxu0 0
  %841 = vmatpush1.bf16.msra.mxu0 0
  %842 = vmatprep.subr.bf16.mxu0 0
  %843 = vmatpush1.bf16.msra.mxu0 0
  %844 = vmatprep.subr.bf16.mxu0 0
  %845 = vmatpush1.bf16.msra.mxu0 0
  %846 = vmatprep.subr.bf16.mxu0 0
  %847 = vmatpush1.bf16.msra.mxu0 0
  %848 = vmatprep.subr.bf16.mxu0 0
  %849 = vmatpush1.bf16.msra.mxu0 0
  %850 = vmatprep.subr.bf16.mxu0 0
  %851 = vmatpush1.bf16.msra.mxu0 0
  %852 = vmatprep.subr.bf16.mxu0 0
  %853 = vmatpush1.bf16.msra.mxu0 0
  %854 = vmatprep.subr.bf16.mxu0 0
  %855 = vmatpush1.bf16.msra.mxu0 0
  %856 = vmatprep.subr.bf16.mxu0 0
  %857 = vmatpush1.bf16.msra.mxu0 0
  %858 = vmatprep.subr.bf16.mxu0 0
  %859 = vmatpush1.bf16.msra.mxu0 0
  %860 = vmatprep.subr.bf16.mxu0 0
  %861 = vmatpush1.bf16.msra.mxu0 0
  %862 = vmatprep.subr.bf16.mxu0 0
  %863 = vmatpush1.bf16.msra.mxu0 0
  %864 = vmatprep.subr.bf16.mxu0 0
  %865 = vmatpush1.bf16.msra.mxu0 0
  %866 = vmatprep.mubr.bf16.mxu0 0
  %867 = vmatmul.mubr.bf16.gmra.mrb[0].mxu0 %v811
  %v868 = vpop.f32.mrb[0].mxu0
  %v869 = vadd.f32 %v796, %v868
  %v870 = vpop.f32.mrb[0].mxu0
  %v871 = vpop.f32.mrb[0].mxu0
  %v872 = vadd.f32 %v796, %v871
  %v873 = vpop.f32.mrb[0].mxu0
  %874 = vmatprep.mubr.bf16.mxu0 0
  %875 = vmatmul.mubr.bf16.gmra.mrb[0].mxu0 %v814
  %v876 = vpop.f32.mrb[0].mxu0
  %v877 = vadd.f32 %v796, %v876
  %v878 = vpop.f32.mrb[0].mxu0
  %v879 = vpop.f32.mrb[0].mxu0
  %v880 = vadd.f32 %v796, %v879
  %v881 = vpop.f32.mrb[0].mxu0
  %882 = vmatprep.mubr.bf16.mxu0 0
  %883 = vmatmul.mubr.bf16.gmra.mrb[0].mxu0 %v817
  %v884 = vpop.f32.mrb[0].mxu0
  %v885 = vadd.f32 %v796, %v884
  %v886 = vpop.f32.mrb[0].mxu0
  %v887 = vpop.f32.mrb[0].mxu0
  %v888 = vadd.f32 %v796, %v887
  %v889 = vpop.f32.mrb[0].mxu0
  %890 = vmatprep.mubr.bf16.mxu0 0
  %891 = vmatmul.mubr.bf16.gmra.mrb[0].mxu0 %v820
  %v892 = vpop.f32.mrb[0].mxu0
  %v893 = vadd.f32 %v796, %v892
  %v894 = vpop.f32.mrb[0].mxu0
  %v895 = vpop.f32.mrb[0].mxu0
  %v896 = vadd.f32 %v796, %v895
  %v897 = vpop.f32.mrb[0].mxu0
  %898 = vmatprep.mubr.bf16.mxu0 0
  %899 = vmatmul.mubr.bf16.gmra.mrb[0].mxu0 %v823
  %v900 = vpop.f32.mrb[0].mxu0
  %v901 = vadd.f32 %v796, %v900
  %v902 = vpop.f32.mrb[0].mxu0
  %v903 = vpop.f32.mrb[0].mxu0
  %v904 = vadd.f32 %v796, %v903
  %v905 = vpop.f32.mrb[0].mxu0
  %906 = vmatprep.mubr.bf16.mxu0 0
  %907 = vmatmul.mubr.bf16.gmra.mrb[0].mxu0 %v826
  %v908 = vpop.f32.mrb[0].mxu0
  %v909 = vadd.f32 %v796, %v908
  %v910 = vpop.f32.mrb[0].mxu0
  %v911 = vpop.f32.mrb[0].mxu0
  %v912 = vadd.f32 %v796, %v911
  %v913 = vpop.f32.mrb[0].mxu0
  %914 = vmatprep.mubr.bf16.mxu0 0
  %915 = vmatmul.mubr.bf16.gmra.mrb[0].mxu0 %v829
  %v916 = vpop.f32.mrb[0].mxu0
  %v917 = vadd.f32 %v796, %v916
  %v918 = vpop.f32.mrb[0].mxu0
  %v919 = vpop.f32.mrb[0].mxu0
  %v920 = vadd.f32 %v796, %v919
  %v921 = vpop.f32.mrb[0].mxu0
  %922 = vmatprep.mubr.bf16.mxu0 0
  %923 = vmatmul.mubr.bf16.gmra.mrb[0].mxu0 %v832
  %v924 = vpop.f32.mrb[0].mxu0
  %v925 = vadd.f32 %v796, %v924
  %v926 = vpop.f32.mrb[0].mxu0
  %v927 = vpop.f32.mrb[0].mxu0
  %v928 = vadd.f32 %v796, %v927
  %v929 = vpop.f32.mrb[0].mxu0
  %930 = vdwg.mxu0
  %v931 = vld [vmem:[%s11] sm:$0xf]
  %v932 = vld [vmem:[%s11 + $0x4] sm:$0xf]
  %v933 = vld [vmem:[%s11 + $0x8] sm:$0xf]
  %v934 = vld [vmem:[%s11 + $0xc] sm:$0xf]
  %v935 = vld [vmem:[%s12] sm:$0x1]
  %v937 = vlaneseq
  %v938 = vshrl.u32 %v937, 7
  %v939 = vsub.s32 0, %v938
  %v940 = vrot.slane %v935, %v939
  %v946 = vunpack.c.l.b16 %v931
  %v947 = vunpack.c.l.b16 %v932
  %v948 = vunpack.c.l.b16 %v933
  %v949 = vunpack.c.l.b16 %v934
  %v950 = vpack.c.b16 %v947, %v946
  %v951 = vpack.c.b16 %v949, %v948
  %954 = vmatprep.subr.bf16.mxu0 0
  %955 = vmatpush1.bf16.msra.mxu0 %v950
  %956 = vmatprep.subr.bf16.mxu0 0
  %957 = vmatpush1.bf16.msra.mxu0 %v951
  %958 = vmatprep.subr.bf16.mxu0 0
  %959 = vmatpush1.bf16.msra.mxu0 0
  %960 = vmatprep.subr.bf16.mxu0 0
  %961 = vmatpush1.bf16.msra.mxu0 0
  %962 = vmatprep.subr.bf16.mxu0 0
  %963 = vmatpush1.bf16.msra.mxu0 0
  %964 = vmatprep.subr.bf16.mxu0 0
  %965 = vmatpush1.bf16.msra.mxu0 0
  %966 = vmatprep.subr.bf16.mxu0 0
  %967 = vmatpush1.bf16.msra.mxu0 0
  %968 = vmatprep.subr.bf16.mxu0 0
  %969 = vmatpush1.bf16.msra.mxu0 0
  %970 = vmatprep.subr.bf16.mxu0 0
  %971 = vmatpush1.bf16.msra.mxu0 0
  %972 = vmatprep.subr.bf16.mxu0 0
  %973 = vmatpush1.bf16.msra.mxu0 0
  %974 = vmatprep.subr.bf16.mxu0 0
  %975 = vmatpush1.bf16.msra.mxu0 0
  %976 = vmatprep.subr.bf16.mxu0 0
  %977 = vmatpush1.bf16.msra.mxu0 0
  %978 = vmatprep.subr.bf16.mxu0 0
  %979 = vmatpush1.bf16.msra.mxu0 0
  %980 = vmatprep.subr.bf16.mxu0 0
  %981 = vmatpush1.bf16.msra.mxu0 0
  %982 = vmatprep.subr.bf16.mxu0 0
  %983 = vmatpush1.bf16.msra.mxu0 0
  %984 = vmatprep.subr.bf16.mxu0 0
  %985 = vmatpush1.bf16.msra.mxu0 0
  %986 = vmatprep.mubr.bf16.mxu0 0
  %987 = vmatmul.mubr.bf16.gmra.mrb[0].mxu0 %v328
  %v988 = vpop.f32.mrb[0].mxu0
  %v989 = vadd.f32 %v940, %v988
  %v990 = vpop.f32.mrb[0].mxu0
  %v991 = vpop.f32.mrb[0].mxu0
  %v992 = vadd.f32 %v940, %v991
  %v993 = vpop.f32.mrb[0].mxu0
  %994 = vmatprep.mubr.bf16.mxu0 0
  %995 = vmatmul.mubr.bf16.gmra.mrb[0].mxu0 %v331
  %v996 = vpop.f32.mrb[0].mxu0
  %v997 = vadd.f32 %v940, %v996
  %v998 = vpop.f32.mrb[0].mxu0
  %v999 = vpop.f32.mrb[0].mxu0
  %v1000 = vadd.f32 %v940, %v999
  %v1001 = vpop.f32.mrb[0].mxu0
  %1002 = vmatprep.mubr.bf16.mxu0 0
  %1003 = vmatmul.mubr.bf16.gmra.mrb[0].mxu0 %v334
  %v1004 = vpop.f32.mrb[0].mxu0
  %v1005 = vadd.f32 %v940, %v1004
  %v1006 = vpop.f32.mrb[0].mxu0
  %v1007 = vpop.f32.mrb[0].mxu0
  %v1008 = vadd.f32 %v940, %v1007
  %v1009 = vpop.f32.mrb[0].mxu0
  %1010 = vmatprep.mubr.bf16.mxu0 0
  %1011 = vmatmul.mubr.bf16.gmra.mrb[0].mxu0 %v337
  %v1012 = vpop.f32.mrb[0].mxu0
  %v1013 = vadd.f32 %v940, %v1012
  %v1014 = vpop.f32.mrb[0].mxu0
  %v1015 = vpop.f32.mrb[0].mxu0
  %v1016 = vadd.f32 %v940, %v1015
  %v1017 = vpop.f32.mrb[0].mxu0
  %1018 = vmatprep.mubr.bf16.mxu0 0
  %1019 = vmatmul.mubr.bf16.gmra.mrb[0].mxu0 %v340
  %v1020 = vpop.f32.mrb[0].mxu0
  %v1021 = vadd.f32 %v940, %v1020
  %v1022 = vpop.f32.mrb[0].mxu0
  %v1023 = vpop.f32.mrb[0].mxu0
  %v1024 = vadd.f32 %v940, %v1023
  %v1025 = vpop.f32.mrb[0].mxu0
  %1026 = vmatprep.mubr.bf16.mxu0 0
  %1027 = vmatmul.mubr.bf16.gmra.mrb[0].mxu0 %v343
  %v1028 = vpop.f32.mrb[0].mxu0
  %v1029 = vadd.f32 %v940, %v1028
  %v1030 = vpop.f32.mrb[0].mxu0
  %v1031 = vpop.f32.mrb[0].mxu0
  %v1032 = vadd.f32 %v940, %v1031
  %v1033 = vpop.f32.mrb[0].mxu0
  %1034 = vmatprep.mubr.bf16.mxu0 0
  %1035 = vmatmul.mubr.bf16.gmra.mrb[0].mxu0 %v346
  %v1036 = vpop.f32.mrb[0].mxu0
  %v1037 = vadd.f32 %v940, %v1036
  %v1038 = vpop.f32.mrb[0].mxu0
  %v1039 = vpop.f32.mrb[0].mxu0
  %v1040 = vadd.f32 %v940, %v1039
  %v1041 = vpop.f32.mrb[0].mxu0
  %1042 = vmatprep.mubr.bf16.mxu0 0
  %1043 = vmatmul.mubr.bf16.gmra.mrb[0].mxu0 %v349
  %v1044 = vpop.f32.mrb[0].mxu0
  %v1045 = vadd.f32 %v940, %v1044
  %v1046 = vpop.f32.mrb[0].mxu0
  %v1047 = vpop.f32.mrb[0].mxu0
  %v1048 = vadd.f32 %v940, %v1047
  %v1049 = vpop.f32.mrb[0].mxu0
  %1050 = vdwg.mxu0
  %v1051 = vxor.u32 %v989, 2147483648
  %v1052 = vxor.u32 %v992, 2147483648
  %v1053 = vxor.u32 %v997, 2147483648
  %v1054 = vxor.u32 %v1000, 2147483648
  %v1055 = vxor.u32 %v1005, 2147483648
  %v1056 = vxor.u32 %v1008, 2147483648
  %v1057 = vxor.u32 %v1013, 2147483648
  %v1058 = vxor.u32 %v1016, 2147483648
  %v1059 = vxor.u32 %v1021, 2147483648
  %v1060 = vxor.u32 %v1024, 2147483648
  %v1061 = vxor.u32 %v1029, 2147483648
  %v1062 = vxor.u32 %v1032, 2147483648
  %v1063 = vxor.u32 %v1037, 2147483648
  %v1064 = vxor.u32 %v1040, 2147483648
  %v1065 = vxor.u32 %v1045, 2147483648
  %v1066 = vxor.u32 %v1048, 2147483648
  %v1067 = vmul.f32 %v1051, 1.442695
  %v1068 = vpow.pop %v1067
  %v1069 = vmul.f32 %v1052, 1.442695
  %v1070 = vpow.pop %v1069
  %v1071 = vmul.f32 %v1053, 1.442695
  %v1072 = vpow.pop %v1071
  %v1073 = vmul.f32 %v1054, 1.442695
  %v1074 = vpow.pop %v1073
  %v1075 = vmul.f32 %v1055, 1.442695
  %v1076 = vpow.pop %v1075
  %v1077 = vmul.f32 %v1056, 1.442695
  %v1078 = vpow.pop %v1077
  %v1079 = vmul.f32 %v1057, 1.442695
  %v1080 = vpow.pop %v1079
  %v1081 = vmul.f32 %v1058, 1.442695
  %v1082 = vpow.pop %v1081
  %v1083 = vmul.f32 %v1059, 1.442695
  %v1084 = vpow.pop %v1083
  %v1085 = vmul.f32 %v1060, 1.442695
  %v1086 = vpow.pop %v1085
  %v1087 = vmul.f32 %v1061, 1.442695
  %v1088 = vpow.pop %v1087
  %v1089 = vmul.f32 %v1062, 1.442695
  %v1090 = vpow.pop %v1089
  %v1091 = vmul.f32 %v1063, 1.442695
  %v1092 = vpow.pop %v1091
  %v1093 = vmul.f32 %v1064, 1.442695
  %v1094 = vpow.pop %v1093
  %v1095 = vmul.f32 %v1065, 1.442695
  %v1096 = vpow.pop %v1095
  %v1097 = vmul.f32 %v1066, 1.442695
  %v1098 = vpow.pop %v1097
  %v1099 = vadd.f32 %v1068, 1.0
  %v1100 = vadd.f32 %v1070, 1.0
  %v1101 = vadd.f32 %v1072, 1.0
  %v1102 = vadd.f32 %v1074, 1.0
  %v1103 = vadd.f32 %v1076, 1.0
  %v1104 = vadd.f32 %v1078, 1.0
  %v1105 = vadd.f32 %v1080, 1.0
  %v1106 = vadd.f32 %v1082, 1.0
  %v1107 = vadd.f32 %v1084, 1.0
  %v1108 = vadd.f32 %v1086, 1.0
  %v1109 = vadd.f32 %v1088, 1.0
  %v1110 = vadd.f32 %v1090, 1.0
  %v1111 = vadd.f32 %v1092, 1.0
  %v1112 = vadd.f32 %v1094, 1.0
  %v1113 = vadd.f32 %v1096, 1.0
  %v1114 = vadd.f32 %v1098, 1.0
  %v1115 = vrcp.pop %v1099
  %v1116 = vmul.f32 1.0, %v1115
  %v1117 = vrcp.pop %v1100
  %v1118 = vmul.f32 1.0, %v1117
  %v1119 = vrcp.pop %v1101
  %v1120 = vmul.f32 1.0, %v1119
  %v1121 = vrcp.pop %v1102
  %v1122 = vmul.f32 1.0, %v1121
  %v1123 = vrcp.pop %v1103
  %v1124 = vmul.f32 1.0, %v1123
  %v1125 = vrcp.pop %v1104
  %v1126 = vmul.f32 1.0, %v1125
  %v1127 = vrcp.pop %v1105
  %v1128 = vmul.f32 1.0, %v1127
  %v1129 = vrcp.pop %v1106
  %v1130 = vmul.f32 1.0, %v1129
  %v1131 = vrcp.pop %v1107
  %v1132 = vmul.f32 1.0, %v1131
  %v1133 = vrcp.pop %v1108
  %v1134 = vmul.f32 1.0, %v1133
  %v1135 = vrcp.pop %v1109
  %v1136 = vmul.f32 1.0, %v1135
  %v1137 = vrcp.pop %v1110
  %v1138 = vmul.f32 1.0, %v1137
  %v1139 = vrcp.pop %v1111
  %v1140 = vmul.f32 1.0, %v1139
  %v1141 = vrcp.pop %v1112
  %v1142 = vmul.f32 1.0, %v1141
  %v1143 = vrcp.pop %v1113
  %v1144 = vmul.f32 1.0, %v1143
  %v1145 = vrcp.pop %v1114
  %v1146 = vmul.f32 1.0, %v1145
  %v1147 = vmul.f32 %v869, %v1116
  %v1148 = vmul.f32 %v872, %v1118
  %v1149 = vmul.f32 %v877, %v1120
  %v1150 = vmul.f32 %v880, %v1122
  %v1151 = vmul.f32 %v885, %v1124
  %v1152 = vmul.f32 %v888, %v1126
  %v1153 = vmul.f32 %v893, %v1128
  %v1154 = vmul.f32 %v896, %v1130
  %v1155 = vmul.f32 %v901, %v1132
  %v1156 = vmul.f32 %v904, %v1134
  %v1157 = vmul.f32 %v909, %v1136
  %v1158 = vmul.f32 %v912, %v1138
  %v1159 = vmul.f32 %v917, %v1140
  %v1160 = vmul.f32 %v920, %v1142
  %v1161 = vmul.f32 %v925, %v1144
  %v1162 = vmul.f32 %v928, %v1146
  %v1163 = vadd.f32 %v579, %v1147
  %v1164 = vadd.f32 %v580, %v1148
  %v1165 = vadd.f32 %v581, %v1149
  %v1166 = vadd.f32 %v582, %v1150
  %v1167 = vadd.f32 %v583, %v1151
  %v1168 = vadd.f32 %v584, %v1152
  %v1169 = vadd.f32 %v585, %v1153
  %v1170 = vadd.f32 %v586, %v1154
  %v1171 = vadd.f32 %v587, %v1155
  %v1172 = vadd.f32 %v588, %v1156
  %v1173 = vadd.f32 %v589, %v1157
  %v1174 = vadd.f32 %v590, %v1158
  %v1175 = vadd.f32 %v591, %v1159
  %v1176 = vadd.f32 %v592, %v1160
  %v1177 = vadd.f32 %v593, %v1161
  %v1178 = vadd.f32 %v594, %v1162
  %v1179 = vmax.f32 %v1163, 0.0
  %v1180 = vmax.f32 %v1164, 0.0
  %v1181 = vmax.f32 %v1165, 0.0
  %v1182 = vmax.f32 %v1166, 0.0
  %v1183 = vmax.f32 %v1167, 0.0
  %v1184 = vmax.f32 %v1168, 0.0
  %v1185 = vmax.f32 %v1169, 0.0
  %v1186 = vmax.f32 %v1170, 0.0
  %v1187 = vmax.f32 %v1171, 0.0
  %v1188 = vmax.f32 %v1172, 0.0
  %v1189 = vmax.f32 %v1173, 0.0
  %v1190 = vmax.f32 %v1174, 0.0
  %v1191 = vmax.f32 %v1175, 0.0
  %v1192 = vmax.f32 %v1176, 0.0
  %v1193 = vmax.f32 %v1177, 0.0
  %v1194 = vmax.f32 %v1178, 0.0
  %v1195 = vpack.c.bf16 %v1180, %v1179
  %v1196 = vpack.c.bf16 %v1182, %v1181
  %v1197 = vpack.c.bf16 %v1184, %v1183
  %v1198 = vpack.c.bf16 %v1186, %v1185
  %v1199 = vpack.c.bf16 %v1188, %v1187
  %v1200 = vpack.c.bf16 %v1190, %v1189
  %v1201 = vpack.c.bf16 %v1192, %v1191
  %v1202 = vpack.c.bf16 %v1194, %v1193
  %v1203 = vld [vmem:[%s13] sm:$0xf]
  %v1204 = vld [vmem:[%s13 + $0x4] sm:$0xf]
  %v1205 = vld [vmem:[%s13 + $0x8] sm:$0xf]
  %v1206 = vld [vmem:[%s13 + $0xc] sm:$0xf]
  %v1207 = vld [vmem:[%s14] sm:$0x1]
  %v1209 = vlaneseq
  %v1210 = vshrl.u32 %v1209, 7
  %v1211 = vsub.s32 0, %v1210
  %v1212 = vrot.slane %v1207, %v1211
  %v1218 = vunpack.c.l.b16 %v1203
  %v1219 = vunpack.c.l.b16 %v1204
  %v1220 = vunpack.c.l.b16 %v1205
  %v1221 = vunpack.c.l.b16 %v1206
  %v1222 = vpack.c.b16 %v1219, %v1218
  %v1223 = vpack.c.b16 %v1221, %v1220
  %v1227 = vsel %vm326, %v1195, 0
  %v1230 = vsel %vm326, %v1196, 0
  %v1233 = vsel %vm326, %v1197, 0
  %v1236 = vsel %vm326, %v1198, 0
  %v1239 = vsel %vm326, %v1199, 0
  %v1242 = vsel %vm326, %v1200, 0
  %v1245 = vsel %vm326, %v1201, 0
  %v1248 = vsel %vm326, %v1202, 0
  %1250 = vmatprep.subr.bf16.mxu0 0
  %1251 = vmatpush1.bf16.msra.mxu0 %v1222
  %1252 = vmatprep.subr.bf16.mxu0 0
  %1253 = vmatpush1.bf16.msra.mxu0 %v1223
  %1254 = vmatprep.subr.bf16.mxu0 0
  %1255 = vmatpush1.bf16.msra.mxu0 0
  %1256 = vmatprep.subr.bf16.mxu0 0
  %1257 = vmatpush1.bf16.msra.mxu0 0
  %1258 = vmatprep.subr.bf16.mxu0 0
  %1259 = vmatpush1.bf16.msra.mxu0 0
  %1260 = vmatprep.subr.bf16.mxu0 0
  %1261 = vmatpush1.bf16.msra.mxu0 0
  %1262 = vmatprep.subr.bf16.mxu0 0
  %1263 = vmatpush1.bf16.msra.mxu0 0
  %1264 = vmatprep.subr.bf16.mxu0 0
  %1265 = vmatpush1.bf16.msra.mxu0 0
  %1266 = vmatprep.subr.bf16.mxu0 0
  %1267 = vmatpush1.bf16.msra.mxu0 0
  %1268 = vmatprep.subr.bf16.mxu0 0
  %1269 = vmatpush1.bf16.msra.mxu0 0
  %1270 = vmatprep.subr.bf16.mxu0 0
  %1271 = vmatpush1.bf16.msra.mxu0 0
  %1272 = vmatprep.subr.bf16.mxu0 0
  %1273 = vmatpush1.bf16.msra.mxu0 0
  %1274 = vmatprep.subr.bf16.mxu0 0
  %1275 = vmatpush1.bf16.msra.mxu0 0
  %1276 = vmatprep.subr.bf16.mxu0 0
  %1277 = vmatpush1.bf16.msra.mxu0 0
  %1278 = vmatprep.subr.bf16.mxu0 0
  %1279 = vmatpush1.bf16.msra.mxu0 0
  %1280 = vmatprep.subr.bf16.mxu0 0
  %1281 = vmatpush1.bf16.msra.mxu0 0
  %1282 = vmatprep.mubr.bf16.mxu0 0
  %1283 = vmatmul.mubr.bf16.gmra.mrb[0].mxu0 %v1227
  %v1284 = vpop.f32.mrb[0].mxu0
  %v1285 = vadd.f32 %v1212, %v1284
  %v1286 = vpop.f32.mrb[0].mxu0
  %v1287 = vpop.f32.mrb[0].mxu0
  %v1288 = vadd.f32 %v1212, %v1287
  %v1289 = vpop.f32.mrb[0].mxu0
  %1290 = vmatprep.mubr.bf16.mxu0 0
  %1291 = vmatmul.mubr.bf16.gmra.mrb[0].mxu0 %v1230
  %v1292 = vpop.f32.mrb[0].mxu0
  %v1293 = vadd.f32 %v1212, %v1292
  %v1294 = vpop.f32.mrb[0].mxu0
  %v1295 = vpop.f32.mrb[0].mxu0
  %v1296 = vadd.f32 %v1212, %v1295
  %v1297 = vpop.f32.mrb[0].mxu0
  %1298 = vmatprep.mubr.bf16.mxu0 0
  %1299 = vmatmul.mubr.bf16.gmra.mrb[0].mxu0 %v1233
  %v1300 = vpop.f32.mrb[0].mxu0
  %v1301 = vadd.f32 %v1212, %v1300
  %v1302 = vpop.f32.mrb[0].mxu0
  %v1303 = vpop.f32.mrb[0].mxu0
  %v1304 = vadd.f32 %v1212, %v1303
  %v1305 = vpop.f32.mrb[0].mxu0
  %1306 = vmatprep.mubr.bf16.mxu0 0
  %1307 = vmatmul.mubr.bf16.gmra.mrb[0].mxu0 %v1236
  %v1308 = vpop.f32.mrb[0].mxu0
  %v1309 = vadd.f32 %v1212, %v1308
  %v1310 = vpop.f32.mrb[0].mxu0
  %v1311 = vpop.f32.mrb[0].mxu0
  %v1312 = vadd.f32 %v1212, %v1311
  %v1313 = vpop.f32.mrb[0].mxu0
  %1314 = vmatprep.mubr.bf16.mxu0 0
  %1315 = vmatmul.mubr.bf16.gmra.mrb[0].mxu0 %v1239
  %v1316 = vpop.f32.mrb[0].mxu0
  %v1317 = vadd.f32 %v1212, %v1316
  %v1318 = vpop.f32.mrb[0].mxu0
  %v1319 = vpop.f32.mrb[0].mxu0
  %v1320 = vadd.f32 %v1212, %v1319
  %v1321 = vpop.f32.mrb[0].mxu0
  %1322 = vmatprep.mubr.bf16.mxu0 0
  %1323 = vmatmul.mubr.bf16.gmra.mrb[0].mxu0 %v1242
  %v1324 = vpop.f32.mrb[0].mxu0
  %v1325 = vadd.f32 %v1212, %v1324
  %v1326 = vpop.f32.mrb[0].mxu0
  %v1327 = vpop.f32.mrb[0].mxu0
  %v1328 = vadd.f32 %v1212, %v1327
  %v1329 = vpop.f32.mrb[0].mxu0
  %1330 = vmatprep.mubr.bf16.mxu0 0
  %1331 = vmatmul.mubr.bf16.gmra.mrb[0].mxu0 %v1245
  %v1332 = vpop.f32.mrb[0].mxu0
  %v1333 = vadd.f32 %v1212, %v1332
  %v1334 = vpop.f32.mrb[0].mxu0
  %v1335 = vpop.f32.mrb[0].mxu0
  %v1336 = vadd.f32 %v1212, %v1335
  %v1337 = vpop.f32.mrb[0].mxu0
  %1338 = vmatprep.mubr.bf16.mxu0 0
  %1339 = vmatmul.mubr.bf16.gmra.mrb[0].mxu0 %v1248
  %v1340 = vpop.f32.mrb[0].mxu0
  %v1341 = vadd.f32 %v1212, %v1340
  %v1342 = vpop.f32.mrb[0].mxu0
  %v1343 = vpop.f32.mrb[0].mxu0
  %v1344 = vadd.f32 %v1212, %v1343
  %v1345 = vpop.f32.mrb[0].mxu0
  %1346 = vdwg.mxu0
  %v1347 = vmax.f32 %v1285, 0.0
  %v1348 = vmax.f32 %v1288, 0.0
  %v1349 = vmax.f32 %v1293, 0.0
  %v1350 = vmax.f32 %v1296, 0.0
  %v1351 = vmax.f32 %v1301, 0.0
  %v1352 = vmax.f32 %v1304, 0.0
  %v1353 = vmax.f32 %v1309, 0.0
  %v1354 = vmax.f32 %v1312, 0.0
  %v1355 = vmax.f32 %v1317, 0.0
  %v1356 = vmax.f32 %v1320, 0.0
  %v1357 = vmax.f32 %v1325, 0.0
  %v1358 = vmax.f32 %v1328, 0.0
  %v1359 = vmax.f32 %v1333, 0.0
  %v1360 = vmax.f32 %v1336, 0.0
  %v1361 = vmax.f32 %v1341, 0.0
  %v1362 = vmax.f32 %v1344, 0.0
  %v1363 = vpack.c.bf16 %v1348, %v1347
  %v1364 = vpack.c.bf16 %v1350, %v1349
  %v1365 = vpack.c.bf16 %v1352, %v1351
  %v1366 = vpack.c.bf16 %v1354, %v1353
  %v1367 = vpack.c.bf16 %v1356, %v1355
  %v1368 = vpack.c.bf16 %v1358, %v1357
  %v1369 = vpack.c.bf16 %v1360, %v1359
  %v1370 = vpack.c.bf16 %v1362, %v1361
  %v1371 = vld [vmem:[%s15] sm:$0xf]
  %v1372 = vld [vmem:[%s15 + $0x4] sm:$0xf]
  %v1373 = vld [vmem:[%s15 + $0x8] sm:$0xf]
  %v1374 = vld [vmem:[%s15 + $0xc] sm:$0xf]
  %v1375 = vld [vmem:[%s16] sm:$0x1]
  %v1377 = vlaneseq
  %v1378 = vshrl.u32 %v1377, 7
  %v1379 = vsub.s32 0, %v1378
  %v1380 = vrot.slane %v1375, %v1379
  %v1386 = vunpack.c.l.b16 %v1371
  %v1387 = vunpack.c.l.b16 %v1372
  %v1388 = vunpack.c.l.b16 %v1373
  %v1389 = vunpack.c.l.b16 %v1374
  %v1390 = vpack.c.b16 %v1387, %v1386
  %v1391 = vpack.c.b16 %v1389, %v1388
  %v1395 = vsel %vm326, %v1363, 0
  %v1398 = vsel %vm326, %v1364, 0
  %v1401 = vsel %vm326, %v1365, 0
  %v1404 = vsel %vm326, %v1366, 0
  %v1407 = vsel %vm326, %v1367, 0
  %v1410 = vsel %vm326, %v1368, 0
  %v1413 = vsel %vm326, %v1369, 0
  %v1416 = vsel %vm326, %v1370, 0
  %1418 = vmatprep.subr.bf16.mxu0 0
  %1419 = vmatpush1.bf16.msra.mxu0 %v1390
  %1420 = vmatprep.subr.bf16.mxu0 0
  %1421 = vmatpush1.bf16.msra.mxu0 %v1391
  %1422 = vmatprep.subr.bf16.mxu0 0
  %1423 = vmatpush1.bf16.msra.mxu0 0
  %1424 = vmatprep.subr.bf16.mxu0 0
  %1425 = vmatpush1.bf16.msra.mxu0 0
  %1426 = vmatprep.subr.bf16.mxu0 0
  %1427 = vmatpush1.bf16.msra.mxu0 0
  %1428 = vmatprep.subr.bf16.mxu0 0
  %1429 = vmatpush1.bf16.msra.mxu0 0
  %1430 = vmatprep.subr.bf16.mxu0 0
  %1431 = vmatpush1.bf16.msra.mxu0 0
  %1432 = vmatprep.subr.bf16.mxu0 0
  %1433 = vmatpush1.bf16.msra.mxu0 0
  %1434 = vmatprep.subr.bf16.mxu0 0
  %1435 = vmatpush1.bf16.msra.mxu0 0
  %1436 = vmatprep.subr.bf16.mxu0 0
  %1437 = vmatpush1.bf16.msra.mxu0 0
  %1438 = vmatprep.subr.bf16.mxu0 0
  %1439 = vmatpush1.bf16.msra.mxu0 0
  %1440 = vmatprep.subr.bf16.mxu0 0
  %1441 = vmatpush1.bf16.msra.mxu0 0
  %1442 = vmatprep.subr.bf16.mxu0 0
  %1443 = vmatpush1.bf16.msra.mxu0 0
  %1444 = vmatprep.subr.bf16.mxu0 0
  %1445 = vmatpush1.bf16.msra.mxu0 0
  %1446 = vmatprep.subr.bf16.mxu0 0
  %1447 = vmatpush1.bf16.msra.mxu0 0
  %1448 = vmatprep.subr.bf16.mxu0 0
  %1449 = vmatpush1.bf16.msra.mxu0 0
  %1450 = vmatprep.mubr.bf16.mxu0 0
  %1451 = vmatmul.mubr.bf16.gmra.mrb[0].mxu0 %v1395
  %v1452 = vpop.f32.mrb[0].mxu0
  %v1453 = vadd.f32 %v1380, %v1452
  %v1454 = vpop.f32.mrb[0].mxu0
  %v1455 = vpop.f32.mrb[0].mxu0
  %v1456 = vadd.f32 %v1380, %v1455
  %v1457 = vpop.f32.mrb[0].mxu0
  %1458 = vmatprep.mubr.bf16.mxu0 0
  %1459 = vmatmul.mubr.bf16.gmra.mrb[0].mxu0 %v1398
  %v1460 = vpop.f32.mrb[0].mxu0
  %v1461 = vadd.f32 %v1380, %v1460
  %v1462 = vpop.f32.mrb[0].mxu0
  %v1463 = vpop.f32.mrb[0].mxu0
  %v1464 = vadd.f32 %v1380, %v1463
  %v1465 = vpop.f32.mrb[0].mxu0
  %1466 = vmatprep.mubr.bf16.mxu0 0
  %1467 = vmatmul.mubr.bf16.gmra.mrb[0].mxu0 %v1401
  %v1468 = vpop.f32.mrb[0].mxu0
  %v1469 = vadd.f32 %v1380, %v1468
  %v1470 = vpop.f32.mrb[0].mxu0
  %v1471 = vpop.f32.mrb[0].mxu0
  %v1472 = vadd.f32 %v1380, %v1471
  %v1473 = vpop.f32.mrb[0].mxu0
  %1474 = vmatprep.mubr.bf16.mxu0 0
  %1475 = vmatmul.mubr.bf16.gmra.mrb[0].mxu0 %v1404
  %v1476 = vpop.f32.mrb[0].mxu0
  %v1477 = vadd.f32 %v1380, %v1476
  %v1478 = vpop.f32.mrb[0].mxu0
  %v1479 = vpop.f32.mrb[0].mxu0
  %v1480 = vadd.f32 %v1380, %v1479
  %v1481 = vpop.f32.mrb[0].mxu0
  %1482 = vmatprep.mubr.bf16.mxu0 0
  %1483 = vmatmul.mubr.bf16.gmra.mrb[0].mxu0 %v1407
  %v1484 = vpop.f32.mrb[0].mxu0
  %v1485 = vadd.f32 %v1380, %v1484
  %v1486 = vpop.f32.mrb[0].mxu0
  %v1487 = vpop.f32.mrb[0].mxu0
  %v1488 = vadd.f32 %v1380, %v1487
  %v1489 = vpop.f32.mrb[0].mxu0
  %1490 = vmatprep.mubr.bf16.mxu0 0
  %1491 = vmatmul.mubr.bf16.gmra.mrb[0].mxu0 %v1410
  %v1492 = vpop.f32.mrb[0].mxu0
  %v1493 = vadd.f32 %v1380, %v1492
  %v1494 = vpop.f32.mrb[0].mxu0
  %v1495 = vpop.f32.mrb[0].mxu0
  %v1496 = vadd.f32 %v1380, %v1495
  %v1497 = vpop.f32.mrb[0].mxu0
  %1498 = vmatprep.mubr.bf16.mxu0 0
  %1499 = vmatmul.mubr.bf16.gmra.mrb[0].mxu0 %v1413
  %v1500 = vpop.f32.mrb[0].mxu0
  %v1501 = vadd.f32 %v1380, %v1500
  %v1502 = vpop.f32.mrb[0].mxu0
  %v1503 = vpop.f32.mrb[0].mxu0
  %v1504 = vadd.f32 %v1380, %v1503
  %v1505 = vpop.f32.mrb[0].mxu0
  %1506 = vmatprep.mubr.bf16.mxu0 0
  %1507 = vmatmul.mubr.bf16.gmra.mrb[0].mxu0 %v1416
  %v1508 = vpop.f32.mrb[0].mxu0
  %v1509 = vadd.f32 %v1380, %v1508
  %v1510 = vpop.f32.mrb[0].mxu0
  %v1511 = vpop.f32.mrb[0].mxu0
  %v1512 = vadd.f32 %v1380, %v1511
  %v1513 = vpop.f32.mrb[0].mxu0
  %1514 = vdwg.mxu0
  %v1515 = vld [vmem:[%s17] sm:$0xf]
  %v1516 = vld [vmem:[%s17 + $0x4] sm:$0xf]
  %v1517 = vld [vmem:[%s17 + $0x8] sm:$0xf]
  %v1518 = vld [vmem:[%s17 + $0xc] sm:$0xf]
  %v1519 = vld [vmem:[%s18] sm:$0x1]
  %v1521 = vlaneseq
  %v1522 = vshrl.u32 %v1521, 7
  %v1523 = vsub.s32 0, %v1522
  %v1524 = vrot.slane %v1519, %v1523
  %v1530 = vunpack.c.l.b16 %v1515
  %v1531 = vunpack.c.l.b16 %v1516
  %v1532 = vunpack.c.l.b16 %v1517
  %v1533 = vunpack.c.l.b16 %v1518
  %v1534 = vpack.c.b16 %v1531, %v1530
  %v1535 = vpack.c.b16 %v1533, %v1532
  %1538 = vmatprep.subr.bf16.mxu0 0
  %1539 = vmatpush1.bf16.msra.mxu0 %v1534
  %1540 = vmatprep.subr.bf16.mxu0 0
  %1541 = vmatpush1.bf16.msra.mxu0 %v1535
  %1542 = vmatprep.subr.bf16.mxu0 0
  %1543 = vmatpush1.bf16.msra.mxu0 0
  %1544 = vmatprep.subr.bf16.mxu0 0
  %1545 = vmatpush1.bf16.msra.mxu0 0
  %1546 = vmatprep.subr.bf16.mxu0 0
  %1547 = vmatpush1.bf16.msra.mxu0 0
  %1548 = vmatprep.subr.bf16.mxu0 0
  %1549 = vmatpush1.bf16.msra.mxu0 0
  %1550 = vmatprep.subr.bf16.mxu0 0
  %1551 = vmatpush1.bf16.msra.mxu0 0
  %1552 = vmatprep.subr.bf16.mxu0 0
  %1553 = vmatpush1.bf16.msra.mxu0 0
  %1554 = vmatprep.subr.bf16.mxu0 0
  %1555 = vmatpush1.bf16.msra.mxu0 0
  %1556 = vmatprep.subr.bf16.mxu0 0
  %1557 = vmatpush1.bf16.msra.mxu0 0
  %1558 = vmatprep.subr.bf16.mxu0 0
  %1559 = vmatpush1.bf16.msra.mxu0 0
  %1560 = vmatprep.subr.bf16.mxu0 0
  %1561 = vmatpush1.bf16.msra.mxu0 0
  %1562 = vmatprep.subr.bf16.mxu0 0
  %1563 = vmatpush1.bf16.msra.mxu0 0
  %1564 = vmatprep.subr.bf16.mxu0 0
  %1565 = vmatpush1.bf16.msra.mxu0 0
  %1566 = vmatprep.subr.bf16.mxu0 0
  %1567 = vmatpush1.bf16.msra.mxu0 0
  %1568 = vmatprep.subr.bf16.mxu0 0
  %1569 = vmatpush1.bf16.msra.mxu0 0
  %1570 = vmatprep.mubr.bf16.mxu0 0
  %1571 = vmatmul.mubr.bf16.gmra.mrb[0].mxu0 %v328
  %v1572 = vpop.f32.mrb[0].mxu0
  %v1573 = vadd.f32 %v1524, %v1572
  %v1574 = vpop.f32.mrb[0].mxu0
  %v1575 = vpop.f32.mrb[0].mxu0
  %v1576 = vadd.f32 %v1524, %v1575
  %v1577 = vpop.f32.mrb[0].mxu0
  %1578 = vmatprep.mubr.bf16.mxu0 0
  %1579 = vmatmul.mubr.bf16.gmra.mrb[0].mxu0 %v331
  %v1580 = vpop.f32.mrb[0].mxu0
  %v1581 = vadd.f32 %v1524, %v1580
  %v1582 = vpop.f32.mrb[0].mxu0
  %v1583 = vpop.f32.mrb[0].mxu0
  %v1584 = vadd.f32 %v1524, %v1583
  %v1585 = vpop.f32.mrb[0].mxu0
  %1586 = vmatprep.mubr.bf16.mxu0 0
  %1587 = vmatmul.mubr.bf16.gmra.mrb[0].mxu0 %v334
  %v1588 = vpop.f32.mrb[0].mxu0
  %v1589 = vadd.f32 %v1524, %v1588
  %v1590 = vpop.f32.mrb[0].mxu0
  %v1591 = vpop.f32.mrb[0].mxu0
  %v1592 = vadd.f32 %v1524, %v1591
  %v1593 = vpop.f32.mrb[0].mxu0
  %1594 = vmatprep.mubr.bf16.mxu0 0
  %1595 = vmatmul.mubr.bf16.gmra.mrb[0].mxu0 %v337
  %v1596 = vpop.f32.mrb[0].mxu0
  %v1597 = vadd.f32 %v1524, %v1596
  %v1598 = vpop.f32.mrb[0].mxu0
  %v1599 = vpop.f32.mrb[0].mxu0
  %v1600 = vadd.f32 %v1524, %v1599
  %v1601 = vpop.f32.mrb[0].mxu0
  %1602 = vmatprep.mubr.bf16.mxu0 0
  %1603 = vmatmul.mubr.bf16.gmra.mrb[0].mxu0 %v340
  %v1604 = vpop.f32.mrb[0].mxu0
  %v1605 = vadd.f32 %v1524, %v1604
  %v1606 = vpop.f32.mrb[0].mxu0
  %v1607 = vpop.f32.mrb[0].mxu0
  %v1608 = vadd.f32 %v1524, %v1607
  %v1609 = vpop.f32.mrb[0].mxu0
  %1610 = vmatprep.mubr.bf16.mxu0 0
  %1611 = vmatmul.mubr.bf16.gmra.mrb[0].mxu0 %v343
  %v1612 = vpop.f32.mrb[0].mxu0
  %v1613 = vadd.f32 %v1524, %v1612
  %v1614 = vpop.f32.mrb[0].mxu0
  %v1615 = vpop.f32.mrb[0].mxu0
  %v1616 = vadd.f32 %v1524, %v1615
  %v1617 = vpop.f32.mrb[0].mxu0
  %1618 = vmatprep.mubr.bf16.mxu0 0
  %1619 = vmatmul.mubr.bf16.gmra.mrb[0].mxu0 %v346
  %v1620 = vpop.f32.mrb[0].mxu0
  %v1621 = vadd.f32 %v1524, %v1620
  %v1622 = vpop.f32.mrb[0].mxu0
  %v1623 = vpop.f32.mrb[0].mxu0
  %v1624 = vadd.f32 %v1524, %v1623
  %v1625 = vpop.f32.mrb[0].mxu0
  %1626 = vmatprep.mubr.bf16.mxu0 0
  %1627 = vmatmul.mubr.bf16.gmra.mrb[0].mxu0 %v349
  %v1628 = vpop.f32.mrb[0].mxu0
  %v1629 = vadd.f32 %v1524, %v1628
  %v1630 = vpop.f32.mrb[0].mxu0
  %v1631 = vpop.f32.mrb[0].mxu0
  %v1632 = vadd.f32 %v1524, %v1631
  %v1633 = vpop.f32.mrb[0].mxu0
  %1634 = vdwg.mxu0
  %v1635 = vxor.u32 %v1573, 2147483648
  %v1636 = vxor.u32 %v1576, 2147483648
  %v1637 = vxor.u32 %v1581, 2147483648
  %v1638 = vxor.u32 %v1584, 2147483648
  %v1639 = vxor.u32 %v1589, 2147483648
  %v1640 = vxor.u32 %v1592, 2147483648
  %v1641 = vxor.u32 %v1597, 2147483648
  %v1642 = vxor.u32 %v1600, 2147483648
  %v1643 = vxor.u32 %v1605, 2147483648
  %v1644 = vxor.u32 %v1608, 2147483648
  %v1645 = vxor.u32 %v1613, 2147483648
  %v1646 = vxor.u32 %v1616, 2147483648
  %v1647 = vxor.u32 %v1621, 2147483648
  %v1648 = vxor.u32 %v1624, 2147483648
  %v1649 = vxor.u32 %v1629, 2147483648
  %v1650 = vxor.u32 %v1632, 2147483648
  %v1651 = vmul.f32 %v1635, 1.442695
  %v1652 = vpow.pop %v1651
  %v1653 = vmul.f32 %v1636, 1.442695
  %v1654 = vpow.pop %v1653
  %v1655 = vmul.f32 %v1637, 1.442695
  %v1656 = vpow.pop %v1655
  %v1657 = vmul.f32 %v1638, 1.442695
  %v1658 = vpow.pop %v1657
  %v1659 = vmul.f32 %v1639, 1.442695
  %v1660 = vpow.pop %v1659
  %v1661 = vmul.f32 %v1640, 1.442695
  %v1662 = vpow.pop %v1661
  %v1663 = vmul.f32 %v1641, 1.442695
  %v1664 = vpow.pop %v1663
  %v1665 = vmul.f32 %v1642, 1.442695
  %v1666 = vpow.pop %v1665
  %v1667 = vmul.f32 %v1643, 1.442695
  %v1668 = vpow.pop %v1667
  %v1669 = vmul.f32 %v1644, 1.442695
  %v1670 = vpow.pop %v1669
  %v1671 = vmul.f32 %v1645, 1.442695
  %v1672 = vpow.pop %v1671
  %v1673 = vmul.f32 %v1646, 1.442695
  %v1674 = vpow.pop %v1673
  %v1675 = vmul.f32 %v1647, 1.442695
  %v1676 = vpow.pop %v1675
  %v1677 = vmul.f32 %v1648, 1.442695
  %v1678 = vpow.pop %v1677
  %v1679 = vmul.f32 %v1649, 1.442695
  %v1680 = vpow.pop %v1679
  %v1681 = vmul.f32 %v1650, 1.442695
  %v1682 = vpow.pop %v1681
  %v1683 = vadd.f32 %v1652, 1.0
  %v1684 = vadd.f32 %v1654, 1.0
  %v1685 = vadd.f32 %v1656, 1.0
  %v1686 = vadd.f32 %v1658, 1.0
  %v1687 = vadd.f32 %v1660, 1.0
  %v1688 = vadd.f32 %v1662, 1.0
  %v1689 = vadd.f32 %v1664, 1.0
  %v1690 = vadd.f32 %v1666, 1.0
  %v1691 = vadd.f32 %v1668, 1.0
  %v1692 = vadd.f32 %v1670, 1.0
  %v1693 = vadd.f32 %v1672, 1.0
  %v1694 = vadd.f32 %v1674, 1.0
  %v1695 = vadd.f32 %v1676, 1.0
  %v1696 = vadd.f32 %v1678, 1.0
  %v1697 = vadd.f32 %v1680, 1.0
  %v1698 = vadd.f32 %v1682, 1.0
  %v1699 = vrcp.pop %v1683
  %v1700 = vmul.f32 1.0, %v1699
  %v1701 = vrcp.pop %v1684
  %v1702 = vmul.f32 1.0, %v1701
  %v1703 = vrcp.pop %v1685
  %v1704 = vmul.f32 1.0, %v1703
  %v1705 = vrcp.pop %v1686
  %v1706 = vmul.f32 1.0, %v1705
  %v1707 = vrcp.pop %v1687
  %v1708 = vmul.f32 1.0, %v1707
  %v1709 = vrcp.pop %v1688
  %v1710 = vmul.f32 1.0, %v1709
  %v1711 = vrcp.pop %v1689
  %v1712 = vmul.f32 1.0, %v1711
  %v1713 = vrcp.pop %v1690
  %v1714 = vmul.f32 1.0, %v1713
  %v1715 = vrcp.pop %v1691
  %v1716 = vmul.f32 1.0, %v1715
  %v1717 = vrcp.pop %v1692
  %v1718 = vmul.f32 1.0, %v1717
  %v1719 = vrcp.pop %v1693
  %v1720 = vmul.f32 1.0, %v1719
  %v1721 = vrcp.pop %v1694
  %v1722 = vmul.f32 1.0, %v1721
  %v1723 = vrcp.pop %v1695
  %v1724 = vmul.f32 1.0, %v1723
  %v1725 = vrcp.pop %v1696
  %v1726 = vmul.f32 1.0, %v1725
  %v1727 = vrcp.pop %v1697
  %v1728 = vmul.f32 1.0, %v1727
  %v1729 = vrcp.pop %v1698
  %v1730 = vmul.f32 1.0, %v1729
  %v1731 = vmul.f32 %v1453, %v1700
  %v1732 = vmul.f32 %v1456, %v1702
  %v1733 = vmul.f32 %v1461, %v1704
  %v1734 = vmul.f32 %v1464, %v1706
  %v1735 = vmul.f32 %v1469, %v1708
  %v1736 = vmul.f32 %v1472, %v1710
  %v1737 = vmul.f32 %v1477, %v1712
  %v1738 = vmul.f32 %v1480, %v1714
  %v1739 = vmul.f32 %v1485, %v1716
  %v1740 = vmul.f32 %v1488, %v1718
  %v1741 = vmul.f32 %v1493, %v1720
  %v1742 = vmul.f32 %v1496, %v1722
  %v1743 = vmul.f32 %v1501, %v1724
  %v1744 = vmul.f32 %v1504, %v1726
  %v1745 = vmul.f32 %v1509, %v1728
  %v1746 = vmul.f32 %v1512, %v1730
  %v1747 = vadd.f32 %v1163, %v1731
  %v1748 = vadd.f32 %v1164, %v1732
  %v1749 = vadd.f32 %v1165, %v1733
  %v1750 = vadd.f32 %v1166, %v1734
  %v1751 = vadd.f32 %v1167, %v1735
  %v1752 = vadd.f32 %v1168, %v1736
  %v1753 = vadd.f32 %v1169, %v1737
  %v1754 = vadd.f32 %v1170, %v1738
  %v1755 = vadd.f32 %v1171, %v1739
  %v1756 = vadd.f32 %v1172, %v1740
  %v1757 = vadd.f32 %v1173, %v1741
  %v1758 = vadd.f32 %v1174, %v1742
  %v1759 = vadd.f32 %v1175, %v1743
  %v1760 = vadd.f32 %v1176, %v1744
  %v1761 = vadd.f32 %v1177, %v1745
  %v1762 = vadd.f32 %v1178, %v1746
  %v1763 = vpack.c.bf16 %v1748, %v1747
  %v1764 = vpack.c.bf16 %v1750, %v1749
  %v1765 = vpack.c.bf16 %v1752, %v1751
  %v1766 = vpack.c.bf16 %v1754, %v1753
  %v1767 = vpack.c.bf16 %v1756, %v1755
  %v1768 = vpack.c.bf16 %v1758, %v1757
  %v1769 = vpack.c.bf16 %v1760, %v1759
  %v1770 = vpack.c.bf16 %v1762, %v1761
  %v1771 = vld [vmem:[%s19] sm:$0xf]
  %v1772 = vld [vmem:[%s19 + $0x4] sm:$0xf]
  %v1773 = vld [vmem:[%s19 + $0x8] sm:$0xf]
  %v1774 = vld [vmem:[%s19 + $0xc] sm:$0xf]
  %v1775 = vld [vmem:[%s20] sm:$0x1]
  %v1777 = vlaneseq
  %v1778 = vshrl.u32 %v1777, 7
  %v1779 = vsub.s32 0, %v1778
  %v1780 = vrot.slane %v1775, %v1779
  %v1786 = vunpack.c.l.b16 %v1771
  %v1787 = vunpack.c.l.b16 %v1772
  %v1788 = vunpack.c.l.b16 %v1773
  %v1789 = vunpack.c.l.b16 %v1774
  %v1790 = vpack.c.b16 %v1787, %v1786
  %v1791 = vpack.c.b16 %v1789, %v1788
  %v1795 = vsel %vm326, %v1763, 0
  %v1798 = vsel %vm326, %v1764, 0
  %v1801 = vsel %vm326, %v1765, 0
  %v1804 = vsel %vm326, %v1766, 0
  %v1807 = vsel %vm326, %v1767, 0
  %v1810 = vsel %vm326, %v1768, 0
  %v1813 = vsel %vm326, %v1769, 0
  %v1816 = vsel %vm326, %v1770, 0
  %1818 = vmatprep.subr.bf16.mxu0 0
  %1819 = vmatpush1.bf16.msra.mxu0 %v1790
  %1820 = vmatprep.subr.bf16.mxu0 0
  %1821 = vmatpush1.bf16.msra.mxu0 %v1791
  %1822 = vmatprep.subr.bf16.mxu0 0
  %1823 = vmatpush1.bf16.msra.mxu0 0
  %1824 = vmatprep.subr.bf16.mxu0 0
  %1825 = vmatpush1.bf16.msra.mxu0 0
  %1826 = vmatprep.subr.bf16.mxu0 0
  %1827 = vmatpush1.bf16.msra.mxu0 0
  %1828 = vmatprep.subr.bf16.mxu0 0
  %1829 = vmatpush1.bf16.msra.mxu0 0
  %1830 = vmatprep.subr.bf16.mxu0 0
  %1831 = vmatpush1.bf16.msra.mxu0 0
  %1832 = vmatprep.subr.bf16.mxu0 0
  %1833 = vmatpush1.bf16.msra.mxu0 0
  %1834 = vmatprep.subr.bf16.mxu0 0
  %1835 = vmatpush1.bf16.msra.mxu0 0
  %1836 = vmatprep.subr.bf16.mxu0 0
  %1837 = vmatpush1.bf16.msra.mxu0 0
  %1838 = vmatprep.subr.bf16.mxu0 0
  %1839 = vmatpush1.bf16.msra.mxu0 0
  %1840 = vmatprep.subr.bf16.mxu0 0
  %1841 = vmatpush1.bf16.msra.mxu0 0
  %1842 = vmatprep.subr.bf16.mxu0 0
  %1843 = vmatpush1.bf16.msra.mxu0 0
  %1844 = vmatprep.subr.bf16.mxu0 0
  %1845 = vmatpush1.bf16.msra.mxu0 0
  %1846 = vmatprep.subr.bf16.mxu0 0
  %1847 = vmatpush1.bf16.msra.mxu0 0
  %1848 = vmatprep.subr.bf16.mxu0 0
  %1849 = vmatpush1.bf16.msra.mxu0 0
  %1850 = vmatprep.mubr.bf16.mxu0 0
  %1851 = vmatmul.mubr.bf16.gmra.mrb[0].mxu0 %v1795
  %v1852 = vpop.f32.mrb[0].mxu0
  %v1853 = vadd.f32 %v1780, %v1852
  %v1854 = vpop.f32.mrb[0].mxu0
  %v1855 = vpop.f32.mrb[0].mxu0
  %v1856 = vadd.f32 %v1780, %v1855
  %v1857 = vpop.f32.mrb[0].mxu0
  %1858 = vmatprep.mubr.bf16.mxu0 0
  %1859 = vmatmul.mubr.bf16.gmra.mrb[0].mxu0 %v1798
  %v1860 = vpop.f32.mrb[0].mxu0
  %v1861 = vadd.f32 %v1780, %v1860
  %v1862 = vpop.f32.mrb[0].mxu0
  %v1863 = vpop.f32.mrb[0].mxu0
  %v1864 = vadd.f32 %v1780, %v1863
  %v1865 = vpop.f32.mrb[0].mxu0
  %1866 = vmatprep.mubr.bf16.mxu0 0
  %1867 = vmatmul.mubr.bf16.gmra.mrb[0].mxu0 %v1801
  %v1868 = vpop.f32.mrb[0].mxu0
  %v1869 = vadd.f32 %v1780, %v1868
  %v1870 = vpop.f32.mrb[0].mxu0
  %v1871 = vpop.f32.mrb[0].mxu0
  %v1872 = vadd.f32 %v1780, %v1871
  %v1873 = vpop.f32.mrb[0].mxu0
  %1874 = vmatprep.mubr.bf16.mxu0 0
  %1875 = vmatmul.mubr.bf16.gmra.mrb[0].mxu0 %v1804
  %v1876 = vpop.f32.mrb[0].mxu0
  %v1877 = vadd.f32 %v1780, %v1876
  %v1878 = vpop.f32.mrb[0].mxu0
  %v1879 = vpop.f32.mrb[0].mxu0
  %v1880 = vadd.f32 %v1780, %v1879
  %v1881 = vpop.f32.mrb[0].mxu0
  %1882 = vmatprep.mubr.bf16.mxu0 0
  %1883 = vmatmul.mubr.bf16.gmra.mrb[0].mxu0 %v1807
  %v1884 = vpop.f32.mrb[0].mxu0
  %v1885 = vadd.f32 %v1780, %v1884
  %v1886 = vpop.f32.mrb[0].mxu0
  %v1887 = vpop.f32.mrb[0].mxu0
  %v1888 = vadd.f32 %v1780, %v1887
  %v1889 = vpop.f32.mrb[0].mxu0
  %1890 = vmatprep.mubr.bf16.mxu0 0
  %1891 = vmatmul.mubr.bf16.gmra.mrb[0].mxu0 %v1810
  %v1892 = vpop.f32.mrb[0].mxu0
  %v1893 = vadd.f32 %v1780, %v1892
  %v1894 = vpop.f32.mrb[0].mxu0
  %v1895 = vpop.f32.mrb[0].mxu0
  %v1896 = vadd.f32 %v1780, %v1895
  %v1897 = vpop.f32.mrb[0].mxu0
  %1898 = vmatprep.mubr.bf16.mxu0 0
  %1899 = vmatmul.mubr.bf16.gmra.mrb[0].mxu0 %v1813
  %v1900 = vpop.f32.mrb[0].mxu0
  %v1901 = vadd.f32 %v1780, %v1900
  %v1902 = vpop.f32.mrb[0].mxu0
  %v1903 = vpop.f32.mrb[0].mxu0
  %v1904 = vadd.f32 %v1780, %v1903
  %v1905 = vpop.f32.mrb[0].mxu0
  %1906 = vmatprep.mubr.bf16.mxu0 0
  %1907 = vmatmul.mubr.bf16.gmra.mrb[0].mxu0 %v1816
  %v1908 = vpop.f32.mrb[0].mxu0
  %v1909 = vadd.f32 %v1780, %v1908
  %v1910 = vpop.f32.mrb[0].mxu0
  %v1911 = vpop.f32.mrb[0].mxu0
  %v1912 = vadd.f32 %v1780, %v1911
  %v1913 = vpop.f32.mrb[0].mxu0
  %1914 = vdwg.mxu0
  %vm1915 = vcmask 752640
  %1916 = vst.msk [vmem:[%s22] sm:$0xff] %vm1915, %v1853
  %1917 = vst.msk [vmem:[%s22 + $0x8] sm:$0xff] %vm1915, %v1856
  %1918 = vst.msk [vmem:[%s22 + $0x10] sm:$0xff] %vm1915, %v1861
  %1919 = vst.msk [vmem:[%s22 + $0x18] sm:$0xff] %vm1915, %v1864
  %1920 = vst.msk [vmem:[%s22 + $0x20] sm:$0xff] %vm1915, %v1869
  %1921 = vst.msk [vmem:[%s22 + $0x28] sm:$0xff] %vm1915, %v1872
  %1922 = vst.msk [vmem:[%s22 + $0x30] sm:$0xff] %vm1915, %v1877
  %1923 = vst.msk [vmem:[%s22 + $0x38] sm:$0xff] %vm1915, %v1880
  %1924 = vst.msk [vmem:[%s22 + $0x40] sm:$0xff] %vm1915, %v1885
  %1925 = vst.msk [vmem:[%s22 + $0x48] sm:$0xff] %vm1915, %v1888
  %1926 = vst.msk [vmem:[%s22 + $0x50] sm:$0xff] %vm1915, %v1893
  %1927 = vst.msk [vmem:[%s22 + $0x58] sm:$0xff] %vm1915, %v1896
  %1928 = vst.msk [vmem:[%s22 + $0x60] sm:$0xff] %vm1915, %v1901
  %1929 = vst.msk [vmem:[%s22 + $0x68] sm:$0xff] %vm1915, %v1904
  %1930 = vst.msk [vmem:[%s22 + $0x70] sm:$0xff] %vm1915, %v1909
  %1931 = vst.msk [vmem:[%s22 + $0x78] sm:$0xff] %vm1915, %v1912
  // Predicated region
  $region86: #{tpu_custom_call.1} parent=0 // pred_check
    _
  $region87: #{tpu_custom_call.1} parent=0 // pred_check_branch
    %1933 = sbr.rel (0) target = $region89
  $region88: #{tpu_custom_call.1} parent=0 // pred_region
    _
  $region89: #{tpu_custom_call.1} parent=0 // pred_fallthru
    _
  // Predicated region
  $region90: #{tpu_custom_call.1} parent=0 // pred_check
    _
  $region91: #{tpu_custom_call.1} parent=0 // pred_check_branch
    %1935 = sbr.rel (0) target = $region93
  $region92: #{tpu_custom_call.1} parent=0 // pred_region
    _
  $region93: #{tpu_custom_call.1} parent=0 // pred_fallthru
    _
  // Predicated region
  $region94: #{tpu_custom_call.1} parent=0 // pred_check
    _
  $region95: #{tpu_custom_call.1} parent=0 // pred_check_branch
    %1937 = sbr.rel (0) target = $region97
  $region96: #{tpu_custom_call.1} parent=0 // pred_region
    _
  $region97: #{tpu_custom_call.1} parent=0 // pred_fallthru
    _
  // Predicated region
  $region98: #{tpu_custom_call.1} parent=0 // pred_check
    _
  $region99: #{tpu_custom_call.1} parent=0 // pred_check_branch
    %1939 = sbr.rel (0) target = $region101
  $region100: #{tpu_custom_call.1} parent=0 // pred_region
    _
  $region101: #{tpu_custom_call.1} parent=0 // pred_fallthru
    _

</llo_original>
